<compile_context>
chip_gen: v5e
topology: v5e:2x2
jax: 0.10.0
libtpu: 0.0.40
codegen_flags: <defaults>
</compile_context>

<pallas_src>
import numpy as np
import jax
import jax.numpy as jnp
from jax.experimental import pallas as pl
from jax.experimental.pallas import tpu as pltpu


def _round_up(x, m):
    return ((x + m - 1) // m) * m


# ----------------------------------------------------------------------------
# Pallas kernel factory.  Grid = (batch, span-tile); span-tile axis is
# "arbitrary" (projection scratch + boundary block resident across it).
#   t == 0 :  P = [h @ W_start + bias_row ; h @ W_end]  -> bf16 scratch [2*S_pad, Cg]
#             boundary slab = P_start[:, Hp:]            (cols 1+E..3+E hold h@Wb+bb)
#   every t:  one one-hot [TILE_NS, 2*S_pad] (sid & S_pad+eid, -1 = padded),
#             gsum = oh @ P (single MXU gather),
#             mid  = relu(gsum[:, :Hp]),
#             span slab = mid @ W2_pack + gsum[:, Hp:]   (col0=score, 1..E=entities)
# ----------------------------------------------------------------------------
def _make_span_ner_kernel(write_boundary: bool):
    def kernel(h_ref, ids_ref, ws_ref, we_ref, brow_ref, w2_ref,
               boundary_ref, span_ref, p_ref):
        t = pl.program_id(1)
        s2, cg = p_ref.shape          # (2*S_pad, Hp+128)
        s_pad = s2 // 2
        hp = cg - 128
        tile_ns = ids_ref.shape[1]

        # ---- once per batch: projections (+ folded biases) and boundary slab ----
        @pl.when(t == 0)
        def _():
            h = h_ref[0]                                                   # [S_pad, Hp] bf16
            ps = jnp.dot(h, ws_ref[...],
                         preferred_element_type=jnp.float32) + brow_ref[...]
            pe = jnp.dot(h, we_ref[...], preferred_element_type=jnp.float32)
            p_ref[pl.ds(0, s_pad), :] = ps.astype(jnp.bfloat16)
            p_ref[pl.ds(s_pad, s_pad), :] = pe.astype(jnp.bfloat16)
            if write_boundary:
                # boundary head was folded into W_start's last-128 lanes.
                boundary_ref[0] = ps[:, hp:].astype(boundary_ref.dtype)

        # ---- per span tile ----
        ids = ids_ref[0]                                                   # [TILE_NS, 2] i32
        sid = ids[:, 0:1]                                                  # start idx (or -1)
        eid = ids[:, 1:2]                                                  # S_pad + end idx (or -1)
        pos = jax.lax.broadcasted_iota(jnp.int32, (tile_ns, s2), 1)
        # -1 sentinel never matches -> padded rows gather exact zeros (zero bias too).
        oh = ((pos == sid) | (pos == eid)).astype(jnp.bfloat16)            # [TILE_NS, 2*S_pad]

        gsum = jnp.dot(oh, p_ref[...], preferred_element_type=jnp.float32)  # [TILE_NS, Cg]

        # span scorer: Linear(2H->H) -> ReLU -> (Dropout=identity) -> Linear(H->1)
        mid = jnp.maximum(gsum[:, :hp], 0.0)                               # b1 already folded
        score = jnp.dot(mid.astype(jnp.bfloat16), w2_ref[...],
                        preferred_element_type=jnp.float32)                # [TILE_NS, 128], col 0
        # cols: 0 = span score, 1..E = entity logits (b2/be folded into gsum).
        span_ref[0] = (score + gsum[:, hp:]).astype(span_ref.dtype)

    return kernel


def _vmem_budget(S_pad, Hp, Cg, tile_ns):
    weights = 2 * Hp * Cg * 2 + Hp * 128 * 2 + Cg * 4        # single-buffered constants
    hidden = 2 * S_pad * Hp * 2                              # double-buffered bf16 input
    ids = 2 * tile_ns * 2 * 4
    scratch = 2 * S_pad * Cg * 2                             # [P_start ; P_end] bf16
    outs = 2 * S_pad * 128 * 2 + 2 * tile_ns * 128 * 2       # bf16 output blocks (x2 buffers)
    total = weights + hidden + ids + scratch + outs
    return int(min(int(total * 1.5) + (8 << 20), 100 << 20))


def _run_span_ner_pallas(hidden, ids, packed, *, tile_ns, use_boundary):
    """hidden [B,S_pad,Hp] bf16; ids [B,Ns_pad,2] i32; packed = padded weights."""
    B, S_pad, Hp = hidden.shape
    Ns_pad = ids.shape[1]
    Cg = packed["W_start"].shape[1]
    NT = Ns_pad // tile_ns

    const = dict(pipeline_mode=pl.Buffered(1))   # block index never changes -> no double-buffer

    grid_spec = pltpu.PrefetchScalarGridSpec(
        num_scalar_prefetch=0,
        grid=(B, NT),
        in_specs=[
            pl.BlockSpec((1, S_pad, Hp), lambda b, t: (b, 0, 0)),      # hidden
            pl.BlockSpec((1, tile_ns, 2), lambda b, t: (b, t, 0)),     # [sid | S_pad+eid] (-1 pad)
            pl.BlockSpec((Hp, Cg), lambda b, t: (0, 0), **const),      # W_start = [W1s | 0,Wes,Wb]
            pl.BlockSpec((Hp, Cg), lambda b, t: (0, 0), **const),      # W_end   = [W1e | 0,Wee,0 ]
            pl.BlockSpec((1, Cg), lambda b, t: (0, 0), **const),       # bias row [b1 | b2,be,bb]
            pl.BlockSpec((Hp, 128), lambda b, t: (0, 0), **const),     # W2 packed (col 0)
        ],
        out_specs=[
            pl.BlockSpec((1, S_pad, 128), lambda b, t: (b, 0, 0)),     # boundary slab (resident over t)
            pl.BlockSpec((1, tile_ns, 128), lambda b, t: (b, t, 0)),   # span slab (lane-dense)
        ],
        scratch_shapes=[
            pltpu.VMEM((2 * S_pad, Cg), jnp.bfloat16),                 # [P_start ; P_end]
        ],
    )

    out_shapes = (
        jax.ShapeDtypeStruct((B, S_pad, 128), jnp.bfloat16),
        jax.ShapeDtypeStruct((B, Ns_pad, 128), jnp.bfloat16),
    )

    return pl.pallas_call(
        _make_span_ner_kernel(use_boundary),
        out_shape=out_shapes,
        grid_spec=grid_spec,
        compiler_params=pltpu.CompilerParams(
            dimension_semantics=("parallel", "arbitrary"),
            vmem_limit_bytes=_vmem_budget(S_pad, Hp, Cg, tile_ns),
        ),
    )(hidden, ids, packed["W_start"], packed["W_end"], packed["brow"], packed["W2p"])


# ----------------------------------------------------------------------------
# Weight packing: pad H -> Hp (multiple of 128); pack all small heads (score,
# entity, boundary) into one 128-lane block appended to the H-wide projection,
# and fold every bias into a single row added to P_start.
# ----------------------------------------------------------------------------
def _pack_weights(params, Hp):
    H = params["W2"].shape[0]
    E = params["be"].shape[-1]
    assert 1 + E + 3 <= 128, "score + entity types + boundary must fit one 128-lane block"
    Cg = Hp + 128

    W_start = np.zeros((Hp, Cg), np.float32)
    W_end = np.zeros((Hp, Cg), np.float32)
    W_start[:H, :H] = np.asarray(params["W1s"])
    W_start[:H, Hp + 1:Hp + 1 + E] = np.asarray(params["Wes"])
    W_start[:H, Hp + 1 + E:Hp + 4 + E] = np.asarray(params["Wb"])   # boundary head folded in
    W_end[:H, :H] = np.asarray(params["W1e"])
    W_end[:H, Hp + 1:Hp + 1 + E] = np.asarray(params["Wee"])

    brow = np.zeros((1, Cg), np.float32)                            # folded into P_start only
    brow[0, :H] = np.asarray(params["b1"])[0]
    brow[0, Hp] = np.asarray(params["b2"])[0, 0]
    brow[0, Hp + 1:Hp + 1 + E] = np.asarray(params["be"])[0]
    brow[0, Hp + 1 + E:Hp + 4 + E] = np.asarray(params["bb"])[0]

    W2p = np.zeros((Hp, 128), np.float32)
    W2p[:H, 0] = np.asarray(params["W2"])[:, 0]

    return {
        "W_start": jnp.asarray(W_start, jnp.bfloat16),
        "W_end": jnp.asarray(W_end, jnp.bfloat16),
        "brow": jnp.asarray(brow, jnp.float32),
        "W2p": jnp.asarray(W2p, jnp.bfloat16),
    }


# ----------------------------------------------------------------------------
# Python wrapper (mirrors SpanNERHead.forward)
# ----------------------------------------------------------------------------
def span_ner_forward(hidden_states, params, attention_mask=None,
                     max_span_length=4, use_boundary_detection=True,
                     tile_ns=256):
    hidden_np = np.asarray(hidden_states, np.float32)
    B, S, H = hidden_np.shape
    E = params["be"].shape[-1]

    if attention_mask is None:
        attention_mask = np.ones((B, S), dtype=bool)
    attention_mask = np.asarray(attention_mask).astype(bool)

    # Host-side data-dependent span enumeration (same as the PyTorch loop).
    candidate_spans = []
    for b in range(B):
        valid_positions = np.where(attention_mask[b])[0]
        spans = []
        for sp in range(len(valid_positions)):
            start_idx = int(valid_positions[sp])
            max_end = min(sp + max_span_length, len(valid_positions))
            for ep in range(sp, max_end):
                spans.append((start_idx, int(valid_positions[ep])))
        candidate_spans.append(spans)

    outputs = {}
    max_spans = max((len(s) for s in candidate_spans), default=0)
    if max_spans == 0:
        if use_boundary_detection:
            outputs["boundary_logits"] = (jnp.asarray(hidden_np) @ jnp.asarray(params["Wb"])
                                          + jnp.asarray(params["bb"]))
        outputs["span_scores"] = jnp.zeros((B, 0, 1), jnp.float32)
        outputs["entity_logits"] = jnp.zeros((B, 0, E), jnp.float32)
        outputs["candidate_spans"] = []
        return outputs

    # Pad everything to vreg/MXU-friendly shapes (slice back afterwards).
    Hp = _round_up(H, 128)
    S_pad = _round_up(S, 128)
    Ns_pad = _round_up(max_spans, tile_ns)

    h_pad = np.zeros((B, S_pad, Hp), np.float32)
    h_pad[:, :S, :H] = hidden_np

    # sid and (S_pad + eid) packed into one int32 slab; -1 == padded span
    # (never matches the one-hot iota, so padded rows gather exact zeros).
    ids = np.full((B, Ns_pad, 2), -1, np.int32)
    for b, spans in enumerate(candidate_spans):
        for i, (st, en) in enumerate(spans):
            ids[b, i, 0] = st
            ids[b, i, 1] = S_pad + en

    packed = _pack_weights(params, Hp)

    boundary_slab, span_slab = _run_span_ner_pallas(
        jnp.asarray(h_pad, jnp.bfloat16), jnp.asarray(ids), packed,
        tile_ns=tile_ns, use_boundary=use_boundary_detection)

    bcol = 1 + E
    if use_boundary_detection:
        outputs["boundary_logits"] = boundary_slab[:, :S, bcol:bcol + 3].astype(jnp.float32)
    outputs["span_scores"] = span_slab[:, :max_spans, 0:1].astype(jnp.float32)
    outputs["entity_logits"] = span_slab[:, :max_spans, 1:1 + E].astype(jnp.float32)
    outputs["candidate_spans"] = candidate_spans
    return outputs


# ----------------------------------------------------------------------------
# Deterministic parameter construction (shapes from SpanNERHead.__init__)
# ----------------------------------------------------------------------------
def make_params(hidden_size, num_entity_types, key):
    ks = jax.random.split(key, 10)
    H, E = hidden_size, num_entity_types

    def lin(k, fan_in, shape):
        return (jax.random.normal(k, shape, jnp.float32) / np.sqrt(fan_in)).astype(jnp.float32)

    W1 = lin(ks[0], 2 * H, (2 * H, H))       # span_scorer[0]
    We = lin(ks[1], 2 * H, (2 * H, E))       # entity_classifier
    return {
        "Wb": lin(ks[2], H, (H, 3)),                       # boundary_classifier
        "bb": lin(ks[3], H, (1, 3)),
        "W1s": W1[:H, :], "W1e": W1[H:, :],
        "b1": lin(ks[4], 2 * H, (1, H)),
        "W2": lin(ks[5], H, (H, 1)),                       # span_scorer[3]
        "b2": lin(ks[6], H, (1, 1)),
        "Wes": We[:H, :], "Wee": We[H:, :],
        "be": lin(ks[7], 2 * H, (1, E)),
        # TODO(synk): span_combiner params unused in forward (dead code in PyTorch module).
    }


# ----------------------------------------------------------------------------
# Pure-numpy f32 reference (correctness sanity check; kernel runs bf16 matmuls
# and bf16 output stores, so tolerances are loosened accordingly)
# ----------------------------------------------------------------------------
def reference_forward(hidden, params, candidate_spans):
    hidden = np.asarray(hidden, np.float32)
    B = hidden.shape[0]
    E = params["be"].shape[-1]
    boundary = hidden @ np.asarray(params["Wb"]) + np.asarray(params["bb"])
    max_spans = max(len(s) for s in candidate_spans)
    scores = np.zeros((B, max_spans, 1), np.float32)
    ents = np.zeros((B, max_spans, E), np.float32)
    for b, spans in enumerate(candidate_spans):
        for i, (st, en) in enumerate(spans):
            fs, fe = hidden[b, st], hidden[b, en]
            mid = np.maximum(fs @ np.asarray(params["W1s"]) + fe @ np.asarray(params["W1e"])
                             + np.asarray(params["b1"])[0], 0.0)
            scores[b, i, 0] = mid @ np.asarray(params["W2"])[:, 0] + np.asarray(params["b2"])[0, 0]
            ents[b, i] = (fs @ np.asarray(params["Wes"]) + fe @ np.asarray(params["Wee"])
                          + np.asarray(params["be"])[0])
    return boundary.astype(np.float32), scores, ents


if __name__ == "__main__":
    B, S, H, E = 2, 8, 32, 5
    max_span_length = 4

    key = jax.random.PRNGKey(0)
    k_h, k_p = jax.random.split(key)
    hidden_states = jax.random.normal(k_h, (B, S, H), jnp.float32)
    params = make_params(H, E, k_p)

    out = span_ner_forward(hidden_states, params, attention_mask=None,
                           max_span_length=max_span_length)
    jax.block_until_ready(out["span_scores"])
    jax.block_until_ready(out["entity_logits"])
    jax.block_until_ready(out["boundary_logits"])

    # sanity check against the f32 reference (bf16 MXU + bf16 stores => loose tolerance)
    ref_b, ref_s, ref_e = reference_forward(np.asarray(hidden_states), params,
                                            out["candidate_spans"])
    np.testing.assert_allclose(np.asarray(out["boundary_logits"]), ref_b,
                               rtol=5e-2, atol=5e-2)
    np.testing.assert_allclose(np.asarray(out["span_scores"]), ref_s,
                               rtol=5e-2, atol=5e-2)
    np.testing.assert_allclose(np.asarray(out["entity_logits"]), ref_e,
                               rtol=5e-2, atol=5e-2)

    print("KERNEL_OK")
</pallas_src>

<mosaic_0001>
module attributes {stable_mosaic.version = 11 : i64} {
  func.func @kernel(%arg0: i32, %arg1: i32, %arg2: memref<1x128x128xbf16, #tpu.memory_space<vmem>>, %arg3: memref<1x256x2xi32, #tpu.memory_space<vmem>>, %arg4: memref<128x256xbf16, #tpu.memory_space<vmem>>, %arg5: memref<128x256xbf16, #tpu.memory_space<vmem>>, %arg6: memref<1x256xf32, #tpu.memory_space<vmem>>, %arg7: memref<128x128xbf16, #tpu.memory_space<vmem>>, %arg8: memref<1x128x128xbf16, #tpu.memory_space<vmem>>, %arg9: memref<1x256x128xbf16, #tpu.memory_space<vmem>>, %arg10: memref<256x256xbf16, #tpu.memory_space<vmem>>) attributes {dimension_semantics = [#tpu.dimension_semantics<parallel>, #tpu.dimension_semantics<arbitrary>], iteration_bounds = array<i64: 2, 1>, scalar_prefetch = 0 : i64, scratch_operands = 1 : i64, tpu.core_type = #tpu.core_type<tc>, window_params = [{transform_indices = @transform_0, window_bounds = array<i64: 1, 128, 128>}, {transform_indices = @transform_1, window_bounds = array<i64: 1, 256, 2>}, {pipeline_mode = #tpu.pipeline_mode<synchronous>, transform_indices = @transform_2, window_bounds = array<i64: 128, 256>}, {pipeline_mode = #tpu.pipeline_mode<synchronous>, transform_indices = @transform_3, window_bounds = array<i64: 128, 256>}, {pipeline_mode = #tpu.pipeline_mode<synchronous>, transform_indices = @transform_4, window_bounds = array<i64: 1, 256>}, {pipeline_mode = #tpu.pipeline_mode<synchronous>, transform_indices = @transform_5, window_bounds = array<i64: 128, 128>}, {transform_indices = @transform_6, window_bounds = array<i64: 1, 128, 128>}, {transform_indices = @transform_7, window_bounds = array<i64: 1, 256, 128>}]} {
    %c0_i32 = arith.constant 0 : i32
    %0 = arith.cmpi eq, %arg1, %c0_i32 : i32
    %1 = arith.extui %0 : i1 to i32
    %c0_i32_0 = arith.constant 0 : i32
    %2 = arith.cmpi ne, %1, %c0_i32_0 : i32
    scf.if %2 {
      %c0_12 = arith.constant 0 : index
      %c0_13 = arith.constant 0 : index
      %c0_14 = arith.constant 0 : index
      %30 = vector.load %arg2[%c0_12, %c0_13, %c0_14] : memref<1x128x128xbf16, #tpu.memory_space<vmem>>, vector<1x128x128xbf16>
      %31 = vector.shape_cast %30 : vector<1x128x128xbf16> to vector<128x128xbf16>
      %c0_15 = arith.constant 0 : index
      %c0_16 = arith.constant 0 : index
      %32 = vector.load %arg4[%c0_15, %c0_16] : memref<128x256xbf16, #tpu.memory_space<vmem>>, vector<128x256xbf16>
      %cst_17 = arith.constant dense<0.000000e+00> : vector<128x256xf32>
      %33 = tpu.matmul %31, %32, %cst_17 {dimension_numbers = #tpu.dot_dimension_numbers<[1], [0], [0], [1], [0, 0, 1, 1], [], []>} : vector<128x128xbf16>, vector<128x256xbf16>, vector<128x256xf32> -> vector<128x256xf32>
      %c0_18 = arith.constant 0 : index
      %c0_19 = arith.constant 0 : index
      %34 = vector.load %arg6[%c0_18, %c0_19] : memref<1x256xf32, #tpu.memory_space<vmem>>, vector<1x256xf32>
      %35 = vector.broadcast %34 : vector<1x256xf32> to vector<128x256xf32>
      %36 = arith.addf %33, %35 : vector<128x256xf32>
      %c0_20 = arith.constant 0 : index
      %c0_21 = arith.constant 0 : index
      %37 = vector.load %arg5[%c0_20, %c0_21] : memref<128x256xbf16, #tpu.memory_space<vmem>>, vector<128x256xbf16>
      %cst_22 = arith.constant dense<0.000000e+00> : vector<128x256xf32>
      %38 = tpu.matmul %31, %37, %cst_22 {dimension_numbers = #tpu.dot_dimension_numbers<[1], [0], [0], [1], [0, 0, 1, 1], [], []>} : vector<128x128xbf16>, vector<128x256xbf16>, vector<128x256xf32> -> vector<128x256xf32>
      %39 = arith.truncf %36 : vector<128x256xf32> to vector<128x256xbf16>
      %c0_23 = arith.constant 0 : index
      %c0_24 = arith.constant 0 : index
      %40 = vector.load %arg10[%c0_23, %c0_24] : memref<256x256xbf16, #tpu.memory_space<vmem>>, vector<128x256xbf16>
      tpu.vector_store %arg10[%c0_23, %c0_24], %39 {strides = array<i32>} : memref<256x256xbf16, #tpu.memory_space<vmem>>, vector<128x256xbf16>,
      %41 = arith.truncf %38 : vector<128x256xf32> to vector<128x256xbf16>
      %c128 = arith.constant 128 : index
      %c0_25 = arith.constant 0 : index
      %42 = vector.load %arg10[%c128, %c0_25] : memref<256x256xbf16, #tpu.memory_space<vmem>>, vector<128x256xbf16>
      tpu.vector_store %arg10[%c128, %c0_25], %41 {strides = array<i32>} : memref<256x256xbf16, #tpu.memory_space<vmem>>, vector<128x256xbf16>,
      %43 = vector.extract_strided_slice %36 {offsets = [0, 128], sizes = [128, 128], strides = [1, 1]} : vector<128x256xf32> to vector<128x128xf32>
      %44 = arith.truncf %43 : vector<128x128xf32> to vector<128x128xbf16>
      %c0_26 = arith.constant 0 : index
      %c0_27 = arith.constant 0 : index
      %c0_28 = arith.constant 0 : index
      %45 = vector.load %arg8[%c0_26, %c0_27, %c0_28] : memref<1x128x128xbf16, #tpu.memory_space<vmem>>, vector<1x128x128xbf16>
      %46 = vector.shape_cast %45 : vector<1x128x128xbf16> to vector<128x128xbf16>
      %47 = vector.shape_cast %44 : vector<128x128xbf16> to vector<1x128x128xbf16>
      tpu.vector_store %arg8[%c0_26, %c0_27, %c0_28], %47 {strides = array<i32>} : memref<1x128x128xbf16, #tpu.memory_space<vmem>>, vector<1x128x128xbf16>,
    } else {
    }
    %c0 = arith.constant 0 : index
    %c0_1 = arith.constant 0 : index
    %c0_2 = arith.constant 0 : index
    %3 = vector.load %arg3[%c0, %c0_1, %c0_2] : memref<1x256x2xi32, #tpu.memory_space<vmem>>, vector<1x256x2xi32>
    %4 = vector.shape_cast %3 : vector<1x256x2xi32> to vector<256x2xi32>
    %5 = vector.extract_strided_slice %4 {offsets = [0, 0], sizes = [256, 1], strides = [1, 1]} : vector<256x2xi32> to vector<256x1xi32>
    %6 = vector.extract_strided_slice %4 {offsets = [0, 1], sizes = [256, 1], strides = [1, 1]} : vector<256x2xi32> to vector<256x1xi32>
    %7 = tpu.iota {dimensions = array<i32: 1>} : vector<256x256xi32>
    %8 = vector.broadcast %5 : vector<256x1xi32> to vector<256x256xi32>
    %9 = arith.cmpi eq, %7, %8 : vector<256x256xi32>
    %10 = vector.broadcast %6 : vector<256x1xi32> to vector<256x256xi32>
    %11 = arith.cmpi eq, %7, %10 : vector<256x256xi32>
    %12 = arith.ori %9, %11 : vector<256x256xi1>
    %13 = arith.extui %12 : vector<256x256xi1> to vector<256x256xi32>
    %14 = arith.sitofp %13 : vector<256x256xi32> to vector<256x256xf32>
    %15 = arith.truncf %14 : vector<256x256xf32> to vector<256x256xbf16>
    %c0_3 = arith.constant 0 : index
    %c0_4 = arith.constant 0 : index
    %16 = vector.load %arg10[%c0_3, %c0_4] : memref<256x256xbf16, #tpu.memory_space<vmem>>, vector<256x256xbf16>
    %cst = arith.constant dense<0.000000e+00> : vector<256x256xf32>
    %17 = tpu.matmul %15, %16, %cst {dimension_numbers = #tpu.dot_dimension_numbers<[1], [0], [0], [1], [0, 0, 1, 1], [], []>} : vector<256x256xbf16>, vector<256x256xbf16>, vector<256x256xf32> -> vector<256x256xf32>
    %18 = vector.extract_strided_slice %17 {offsets = [0, 0], sizes = [256, 128], strides = [1, 1]} : vector<256x256xf32> to vector<256x128xf32>
    %cst_5 = arith.constant 0.000000e+00 : f32
    %19 = vector.broadcast %cst_5 : f32 to vector<256x128xf32>
    %20 = arith.maximumf %18, %19 : vector<256x128xf32>
    %21 = arith.truncf %20 : vector<256x128xf32> to vector<256x128xbf16>
    %c0_6 = arith.constant 0 : index
    %c0_7 = arith.constant 0 : index
    %22 = vector.load %arg7[%c0_6, %c0_7] : memref<128x128xbf16, #tpu.memory_space<vmem>>, vector<128x128xbf16>
    %cst_8 = arith.constant dense<0.000000e+00> : vector<256x128xf32>
    %23 = tpu.matmul %21, %22, %cst_8 {dimension_numbers = #tpu.dot_dimension_numbers<[1], [0], [0], [1], [0, 0, 1, 1], [], []>} : vector<256x128xbf16>, vector<128x128xbf16>, vector<256x128xf32> -> vector<256x128xf32>
    %24 = vector.extract_strided_slice %17 {offsets = [0, 128], sizes = [256, 128], strides = [1, 1]} : vector<256x256xf32> to vector<256x128xf32>
    %25 = arith.addf %23, %24 : vector<256x128xf32>
    %26 = arith.truncf %25 : vector<256x128xf32> to vector<256x128xbf16>
    %c0_9 = arith.constant 0 : index
    %c0_10 = arith.constant 0 : index
    %c0_11 = arith.constant 0 : index
    %27 = vector.load %arg9[%c0_9, %c0_10, %c0_11] : memref<1x256x128xbf16, #tpu.memory_space<vmem>>, vector<1x256x128xbf16>
    %28 = vector.shape_cast %27 : vector<1x256x128xbf16> to vector<256x128xbf16>
    %29 = vector.shape_cast %26 : vector<256x128xbf16> to vector<1x256x128xbf16>
    tpu.vector_store %arg9[%c0_9, %c0_10, %c0_11], %29 {strides = array<i32>} : memref<1x256x128xbf16, #tpu.memory_space<vmem>>, vector<1x256x128xbf16>,
    return
  }
  func.func @transform_0(%arg0: i32, %arg1: i32) -> (i32, i32, i32) {
    %c0_i32 = arith.constant 0 : i32
    %c0_i32_0 = arith.constant 0 : i32
    %c0_i32_1 = arith.constant 0 : i32
    return %arg0, %c0_i32, %c0_i32_0 : i32, i32, i32
  }
  func.func @transform_1(%arg0: i32, %arg1: i32) -> (i32, i32, i32) {
    %c0_i32 = arith.constant 0 : i32
    %c0_i32_0 = arith.constant 0 : i32
    return %arg0, %arg1, %c0_i32 : i32, i32, i32
  }
  func.func @transform_2(%arg0: i32, %arg1: i32) -> (i32, i32) {
    %c0_i32 = arith.constant 0 : i32
    %c0_i32_0 = arith.constant 0 : i32
    %c0_i32_1 = arith.constant 0 : i32
    return %c0_i32, %c0_i32_0 : i32, i32
  }
  func.func @transform_3(%arg0: i32, %arg1: i32) -> (i32, i32) {
    %c0_i32 = arith.constant 0 : i32
    %c0_i32_0 = arith.constant 0 : i32
    %c0_i32_1 = arith.constant 0 : i32
    return %c0_i32, %c0_i32_0 : i32, i32
  }
  func.func @transform_4(%arg0: i32, %arg1: i32) -> (i32, i32) {
    %c0_i32 = arith.constant 0 : i32
    %c0_i32_0 = arith.constant 0 : i32
    %c0_i32_1 = arith.constant 0 : i32
    return %c0_i32, %c0_i32_0 : i32, i32
  }
  func.func @transform_5(%arg0: i32, %arg1: i32) -> (i32, i32) {
    %c0_i32 = arith.constant 0 : i32
    %c0_i32_0 = arith.constant 0 : i32
    %c0_i32_1 = arith.constant 0 : i32
    return %c0_i32, %c0_i32_0 : i32, i32
  }
  func.func @transform_6(%arg0: i32, %arg1: i32) -> (i32, i32, i32) {
    %c0_i32 = arith.constant 0 : i32
    %c0_i32_0 = arith.constant 0 : i32
    %c0_i32_1 = arith.constant 0 : i32
    return %arg0, %c0_i32, %c0_i32_0 : i32, i32, i32
  }
  func.func @transform_7(%arg0: i32, %arg1: i32) -> (i32, i32, i32) {
    %c0_i32 = arith.constant 0 : i32
    %c0_i32_0 = arith.constant 0 : i32
    return %arg0, %arg1, %c0_i32 : i32, i32, i32
  }
}

</mosaic_0001>

<llo_original>
// kernel: tpu_custom_call.1
$region0: #{tpu_custom_call.1}
  #allocation0 [shape = 'u32[]', space=smem, size = 0x4, offset = 0x4, fixed_abs, tag = 'smem constant byte address 0x4 - core index']
  #allocation1 [shape = 'u32[72,128]{1,0:T(1,128)}', space=vmem, size = 0x9000, scoped, tag = 'internal scratch']
  #allocation2 [shape = 'bf16[256,256]{1,0:T(8,128)(2,1)}', space=vmem, size = 0x20000, scoped, tag = 'scratch operand']
  %s0 = inlined_call_operand.vmem [shape: bf16[2,128,128], index: 0, kind: input, shape index: {}]
  %s1 = inlined_call_operand.vmem [shape: s32[2,256,2], index: 1, kind: input, shape index: {}]
  %s2 = inlined_call_operand.vmem [shape: bf16[128,256], index: 2, kind: input, shape index: {}]
  %s3 = inlined_call_operand.vmem [shape: bf16[128,256], index: 3, kind: input, shape index: {}]
  %s4 = inlined_call_operand.vmem [shape: f32[1,256], index: 4, kind: input, shape index: {}]
  %s5 = inlined_call_operand.vmem [shape: bf16[128,128], index: 5, kind: input, shape index: {}]
  %s6 = inlined_call_operand.hbm [shape: bf16[2,128,128], index: 6, kind: output, shape index: {0}]
  %s7 = inlined_call_operand.hbm [shape: bf16[2,256,128], index: 7, kind: output, shape index: {1}]
  %8 = xla_tuple %s6, %s7
  %s9 = sld [smem:[#allocation0]]
  $region69: #{tpu_custom_call.1} parent=0
    _
  %s11 = ssub.s32 1, %s9
  %s12 = scalar_select 0, %s11, %s9
  $region1: #{tpu_custom_call.1} parent=0
    #allocation3 [shape = 'u8[65536]{0}', space=vmem, size = 0x10000, scoped, tag = 'output window, operand 0']
    #allocation4 [shape = 's32[2]{0}', space=sflag, size = 0x8, scoped, tag = 'scoped memory for tpu_custom_call.1']
    #allocation5 [shape = 'u8[131072]{0}', space=vmem, size = 0x20000, scoped, tag = 'output window, operand 1']
    #allocation6 [shape = 's32[2]{0}', space=sflag, size = 0x8, scoped, tag = 'scoped memory for tpu_custom_call.1']
    %13 = vsyncpa [#allocation4], 0
    %s14 = scalar_lea.sflag [#allocation4], 1
    %15 = vsyncpa %s14, 0
    %16 = vsyncpa [#allocation6], 0
    %s17 = scalar_lea.sflag [#allocation6], 1
    %18 = vsyncpa %s17, 0
    loop: start=0, step=1, limit=4
    $region2: #{tpu_custom_call.1} parent=1 // loop_pre_header
      _
    $region3: #{tpu_custom_call.1} parent=1 // loop_header
      %s20 = sphi 0, %s24
      %p21 = scmp.ge.s32.totalorder %s20, 4
      %s27 = sphi 0, %s39
      %s28 = sphi 0, %s35
      %s29 = sphi 0, %s27
      %s30 = sphi 0, %s28
      %s31 = sphi 0, %s29
      %s32 = sphi 0, %s30
      %s42 = sphi 0, %s44
      %s45 = sphi 0, %s42
      %s46 = sphi 0, %s45
      %s62 = sphi 0, %s46
      %s70 = sphi 0, %s72
      %s73 = sphi 0, %s70
      %s74 = sphi 0, %s73
      %s90 = sphi 0, %s74
      %s94 = sphi 0, %s94
      %s96 = sphi 0, %s94
      %s97 = sphi 0, %s96
      %s111 = sphi 0, %s97
      %s115 = sphi 0, %s115
      %s117 = sphi 0, %s115
      %s118 = sphi 0, %s117
      %s132 = sphi 0, %s118
      %s136 = sphi 0, %s136
      %s138 = sphi 0, %s136
      %s139 = sphi 0, %s138
      %s153 = sphi 0, %s139
      %s157 = sphi 0, %s157
      %s159 = sphi 0, %s157
      %s160 = sphi 0, %s159
      %s174 = sphi 0, %s160
      %s180 = sphi 0, %s182
      %s183 = sphi 0, %s180
      %s184 = sphi 0, %s183
      %s200 = sphi 0, %s184
      %s208 = sphi 0, %s210
      %s211 = sphi 0, %s208
      %s212 = sphi 0, %s211
      %s228 = sphi 0, %s212
    $region4: #{tpu_custom_call.1} parent=1 // loop_header_branch
      %23 = sbr.rel (%p21) target = $region8
    $region5: #{tpu_custom_call.1} parent=1 // loop_body
      %s25 = ssub.s32 %s20, 1
      %s26 = ssub.s32 %s20, 2
      %s33 = sadd.s32 1, %s28
      %p34 = scmp.ge.s32.totalorder %s33, 1
      %s35 = scalar_select %p34, 0, %s33
      %s36 = sadd.s32 1, %s27
      %s37 = scalar_select %p34, %s36, %s27
      %p38 = scmp.ge.s32.totalorder %s37, 2
      %s39 = scalar_select %p38, 0, %s37
      %s40 = ssub.s32 %s27, %s39
      %p41 = scmp.eq.s32.totalorder %s40, 0
      %s43 = sadd.s32 %s42, 1
      %s44 = scalar_select %p41, %s42, %s43
      %p47 = pneg %p41
      %p48 = scmp.eq.s32.totalorder %s20, 1
      %p49 = por %p47, %p48
      %p50 = scmp.ne.s32.totalorder %s42, %s45
      %p51 = scmp.eq.s32.totalorder %s20, 0
      %p52 = por %p50, %p51
      %p53 = scmp.ne.s32.totalorder %s42, %s45
      %p54 = scmp.eq.s32.totalorder %s25, 1
      %p55 = por %p53, %p54
      %p56 = scmp.ne.s32.totalorder %s45, %s46
      %p57 = scmp.eq.s32.totalorder %s25, 0
      %p58 = por %p56, %p57
      %p59 = scmp.ne.s32.totalorder %s45, %s46
      %p60 = scmp.eq.s32.totalorder %s26, 1
      %p61 = por %p59, %p60
      %p63 = scmp.ne.s32.totalorder %s46, %s62
      %p64 = scmp.eq.s32.totalorder %s26, 0
      %p65 = por %p63, %p64
      %s66 = ssub.s32 %s27, %s39
      %s67 = ssub.s32 %s28, %s35
      %s68 = sor.u32 %s66, %s67
      %p69 = scmp.eq.s32.totalorder %s68, 0
      %s71 = sadd.s32 %s70, 1
      %s72 = scalar_select %p69, %s70, %s71
      %p75 = pneg %p69
      %p76 = scmp.eq.s32.totalorder %s20, 1
      %p77 = por %p75, %p76
      %p78 = scmp.ne.s32.totalorder %s70, %s73
      %p79 = scmp.eq.s32.totalorder %s20, 0
      %p80 = por %p78, %p79
      %p81 = scmp.ne.s32.totalorder %s70, %s73
      %p82 = scmp.eq.s32.totalorder %s25, 1
      %p83 = por %p81, %p82
      %p84 = scmp.ne.s32.totalorder %s73, %s74
      %p85 = scmp.eq.s32.totalorder %s25, 0
      %p86 = por %p84, %p85
      %p87 = scmp.ne.s32.totalorder %s73, %s74
      %p88 = scmp.eq.s32.totalorder %s26, 1
      %p89 = por %p87, %p88
      %p91 = scmp.ne.s32.totalorder %s74, %s90
      %p92 = scmp.eq.s32.totalorder %s26, 0
      %p93 = por %p91, %p92
      %s95 = sadd.s32 %s94, 1
      %p98 = scmp.eq.s32.totalorder %s20, 1
      %p99 = scmp.ne.s32.totalorder %s94, %s96
      %p100 = scmp.eq.s32.totalorder %s20, 0
      %p101 = por %p99, %p100
      %p102 = scmp.ne.s32.totalorder %s94, %s96
      %p103 = scmp.eq.s32.totalorder %s25, 1
      %p104 = por %p102, %p103
      %p105 = scmp.ne.s32.totalorder %s96, %s97
      %p106 = scmp.eq.s32.totalorder %s25, 0
      %p107 = por %p105, %p106
      %p108 = scmp.ne.s32.totalorder %s96, %s97
      %p109 = scmp.eq.s32.totalorder %s26, 1
      %p110 = por %p108, %p109
      %p112 = scmp.ne.s32.totalorder %s97, %s111
      %p113 = scmp.eq.s32.totalorder %s26, 0
      %p114 = por %p112, %p113
      %s116 = sadd.s32 %s115, 1
      %p119 = scmp.eq.s32.totalorder %s20, 1
      %p120 = scmp.ne.s32.totalorder %s115, %s117
      %p121 = scmp.eq.s32.totalorder %s20, 0
      %p122 = por %p120, %p121
      %p123 = scmp.ne.s32.totalorder %s115, %s117
      %p124 = scmp.eq.s32.totalorder %s25, 1
      %p125 = por %p123, %p124
      %p126 = scmp.ne.s32.totalorder %s117, %s118
      %p127 = scmp.eq.s32.totalorder %s25, 0
      %p128 = por %p126, %p127
      %p129 = scmp.ne.s32.totalorder %s117, %s118
      %p130 = scmp.eq.s32.totalorder %s26, 1
      %p131 = por %p129, %p130
      %p133 = scmp.ne.s32.totalorder %s118, %s132
      %p134 = scmp.eq.s32.totalorder %s26, 0
      %p135 = por %p133, %p134
      %s137 = sadd.s32 %s136, 1
      %p140 = scmp.eq.s32.totalorder %s20, 1
      %p141 = scmp.ne.s32.totalorder %s136, %s138
      %p142 = scmp.eq.s32.totalorder %s20, 0
      %p143 = por %p141, %p142
      %p144 = scmp.ne.s32.totalorder %s136, %s138
      %p145 = scmp.eq.s32.totalorder %s25, 1
      %p146 = por %p144, %p145
      %p147 = scmp.ne.s32.totalorder %s138, %s139
      %p148 = scmp.eq.s32.totalorder %s25, 0
      %p149 = por %p147, %p148
      %p150 = scmp.ne.s32.totalorder %s138, %s139
      %p151 = scmp.eq.s32.totalorder %s26, 1
      %p152 = por %p150, %p151
      %p154 = scmp.ne.s32.totalorder %s139, %s153
      %p155 = scmp.eq.s32.totalorder %s26, 0
      %p156 = por %p154, %p155
      %s158 = sadd.s32 %s157, 1
      %p161 = scmp.eq.s32.totalorder %s20, 1
      %p162 = scmp.ne.s32.totalorder %s157, %s159
      %p163 = scmp.eq.s32.totalorder %s20, 0
      %p164 = por %p162, %p163
      %p165 = scmp.ne.s32.totalorder %s157, %s159
      %p166 = scmp.eq.s32.totalorder %s25, 1
      %p167 = por %p165, %p166
      %p168 = scmp.ne.s32.totalorder %s159, %s160
      %p169 = scmp.eq.s32.totalorder %s25, 0
      %p170 = por %p168, %p169
      %p171 = scmp.ne.s32.totalorder %s159, %s160
      %p172 = scmp.eq.s32.totalorder %s26, 1
      %p173 = por %p171, %p172
      %p175 = scmp.ne.s32.totalorder %s160, %s174
      %p176 = scmp.eq.s32.totalorder %s26, 0
      %p177 = por %p175, %p176
      %s178 = ssub.s32 %s27, %s39
      %p179 = scmp.eq.s32.totalorder %s178, 0
      %s181 = sadd.s32 %s180, 1
      %s182 = scalar_select %p179, %s180, %s181
      %p185 = pneg %p179
      %p186 = scmp.eq.s32.totalorder %s20, 1
      %p187 = por %p185, %p186
      %p188 = scmp.ne.s32.totalorder %s180, %s183
      %p189 = scmp.eq.s32.totalorder %s20, 0
      %p190 = por %p188, %p189
      %p191 = scmp.ne.s32.totalorder %s180, %s183
      %p192 = scmp.eq.s32.totalorder %s25, 1
      %p193 = por %p191, %p192
      %p194 = scmp.ne.s32.totalorder %s183, %s184
      %p195 = scmp.eq.s32.totalorder %s25, 0
      %p196 = por %p194, %p195
      %p197 = scmp.ne.s32.totalorder %s183, %s184
      %p198 = scmp.eq.s32.totalorder %s26, 1
      %p199 = por %p197, %p198
      %p201 = scmp.ne.s32.totalorder %s184, %s200
      %p202 = scmp.eq.s32.totalorder %s26, 0
      %p203 = por %p201, %p202
      %s204 = ssub.s32 %s27, %s39
      %s205 = ssub.s32 %s28, %s35
      %s206 = sor.u32 %s204, %s205
      %p207 = scmp.eq.s32.totalorder %s206, 0
      %s209 = sadd.s32 %s208, 1
      %s210 = scalar_select %p207, %s208, %s209
      %p213 = pneg %p207
      %p214 = scmp.eq.s32.totalorder %s20, 1
      %p215 = por %p213, %p214
      %p216 = scmp.ne.s32.totalorder %s208, %s211
      %p217 = scmp.eq.s32.totalorder %s20, 0
      %p218 = por %p216, %p217
      %p219 = scmp.ne.s32.totalorder %s208, %s211
      %p220 = scmp.eq.s32.totalorder %s25, 1
      %p221 = por %p219, %p220
      %p222 = scmp.ne.s32.totalorder %s211, %s212
      %p223 = scmp.eq.s32.totalorder %s25, 0
      %p224 = por %p222, %p223
      %p225 = scmp.ne.s32.totalorder %s211, %s212
      %p226 = scmp.eq.s32.totalorder %s26, 1
      %p227 = por %p225, %p226
      %p229 = scmp.ne.s32.totalorder %s212, %s228
      %p230 = scmp.eq.s32.totalorder %s26, 0
      %p231 = por %p229, %p230
      %p232 = scmp.le.s32.totalorder 1, %s20
      %p233 = scmp.lt.s32.totalorder %s20, 3
      %p234 = pnand %p232, %p233
      %p235 = pneg %p234
      // Predicated region
      $region9: #{tpu_custom_call.1} parent=5 // pred_check
        _
      $region10: #{tpu_custom_call.1} parent=5 // pred_check_branch
        %237 = sbr.rel (%p234) target = $region12
      $region11: #{tpu_custom_call.1} parent=5 // pred_region
        %s238 = ssub.s32 %s20, 1
        // Predicated region
        $region13: #{tpu_custom_call.1} parent=11 // pred_check
          %p239 = pneg %p107
        $region14: #{tpu_custom_call.1} parent=11 // pred_check_branch
          %241 = sbr.rel (%p239) target = $region16
        $region15: #{tpu_custom_call.1} parent=11 // pred_region
          _
        $region16: #{tpu_custom_call.1} parent=11 // pred_fallthru
          _
        // Predicated region
        $region17: #{tpu_custom_call.1} parent=11 // pred_check
          %p242 = pneg %p128
        $region18: #{tpu_custom_call.1} parent=11 // pred_check_branch
          %244 = sbr.rel (%p242) target = $region20
        $region19: #{tpu_custom_call.1} parent=11 // pred_region
          _
        $region20: #{tpu_custom_call.1} parent=11 // pred_fallthru
          _
        // Predicated region
        $region21: #{tpu_custom_call.1} parent=11 // pred_check
          %p245 = pneg %p149
        $region22: #{tpu_custom_call.1} parent=11 // pred_check_branch
          %247 = sbr.rel (%p245) target = $region24
        $region23: #{tpu_custom_call.1} parent=11 // pred_region
          _
        $region24: #{tpu_custom_call.1} parent=11 // pred_fallthru
          _
        // Predicated region
        $region25: #{tpu_custom_call.1} parent=11 // pred_check
          %p248 = pneg %p170
        $region26: #{tpu_custom_call.1} parent=11 // pred_check_branch
          %250 = sbr.rel (%p248) target = $region28
        $region27: #{tpu_custom_call.1} parent=11 // pred_region
          _
        $region28: #{tpu_custom_call.1} parent=11 // pred_fallthru
          _
      $region12: #{tpu_custom_call.1} parent=5 // pred_fallthru
        _
      %p251 = scmp.lt.s32.totalorder %s20, 2
      // Predicated region
      $region29: #{tpu_custom_call.1} parent=5 // pred_check
        %p252 = pneg %p251
      $region30: #{tpu_custom_call.1} parent=5 // pred_check_branch
        %254 = sbr.rel (%p252) target = $region32
      $region31: #{tpu_custom_call.1} parent=5 // pred_region
        // Predicated region
        $region33: #{tpu_custom_call.1} parent=31 // pred_check
          %p255 = pneg %p52
        $region34: #{tpu_custom_call.1} parent=31 // pred_check_branch
          %257 = sbr.rel (%p255) target = $region36
        $region35: #{tpu_custom_call.1} parent=31 // pred_region
          %p258 = scmp.lt.s32.totalorder %s27, 1
          %s259 = scalar_select %p258, %s27, 1
          %s260 = smul.addr %s259, 16
          %s261 = smul.addr %s260, 4
          %s262 = scalar_lea.vmem %s0, %s261
        $region36: #{tpu_custom_call.1} parent=31 // pred_fallthru
          _
        // Predicated region
        $region37: #{tpu_custom_call.1} parent=31 // pred_check
          %p263 = pneg %p80
        $region38: #{tpu_custom_call.1} parent=31 // pred_check_branch
          %265 = sbr.rel (%p263) target = $region40
        $region39: #{tpu_custom_call.1} parent=31 // pred_region
          %s266 = smul.u32 32, %s28
          %p267 = scmp.lt.s32.totalorder %s27, 1
          %s268 = scalar_select %p267, %s27, 1
          %p269 = scmp.lt.s32.totalorder %s266, 31
          %s270 = scalar_select %p269, %s266, 31
          %s271 = smul.addr %s268, 32
          %s272 = sadd.s32 %s270, %s271
          %s273 = smul.addr %s272, 8
          %s274 = scalar_lea.vmem %s1, %s273
          %s275 = smul.u32 32, %s28
        $region40: #{tpu_custom_call.1} parent=31 // pred_fallthru
          _
      $region32: #{tpu_custom_call.1} parent=5 // pred_fallthru
        _
      %p276 = scmp.le.s32.totalorder 1, %s20
      %p277 = scmp.lt.s32.totalorder %s20, 3
      %p278 = pnand %p276, %p277
      %p279 = pneg %p278
      // Predicated region
      $region41: #{tpu_custom_call.1} parent=5 // pred_check
        _
      $region42: #{tpu_custom_call.1} parent=5 // pred_check_branch
        %281 = sbr.rel (%p278) target = $region44
      $region43: #{tpu_custom_call.1} parent=5 // pred_region
        %s282 = ssub.s32 %s20, 1
        %p283 = scmp.lt.s32.totalorder %s29, 1
        %s284 = scalar_select %p283, %s29, 1
        %s285 = smul.addr %s284, 16
        %s286 = smul.addr %s285, 4
        %s287 = scalar_lea.vmem %s0, %s286
        %p288 = pneg %p58
        %p289 = pneg %p55
        %s290 = smul.u32 32, %s30
        %p291 = scmp.lt.s32.totalorder %s29, 1
        %s292 = scalar_select %p291, %s29, 1
        %p293 = scmp.lt.s32.totalorder %s290, 31
        %s294 = scalar_select %p293, %s290, 31
        %s295 = smul.addr %s292, 32
        %s296 = sadd.s32 %s294, %s295
        %s297 = smul.addr %s296, 8
        %s298 = scalar_lea.vmem %s1, %s297
        %p299 = pneg %p86
        %p300 = pneg %p83
        %p301 = pneg %p107
        %p302 = pneg %p104
        %p303 = pneg %p128
        %p304 = pneg %p125
        %p305 = pneg %p149
        %p306 = pneg %p146
        %p307 = pneg %p170
        %p308 = pneg %p167
        %p309 = pneg %p196
        %p310 = pneg %p193
        %s311 = sand.u32 %s183, 1
        %s312 = scalar_lea.sflag [#allocation4], %s311
        %s313 = sand.u32 %s183, 1
        %s314 = smul.addr %s313, 64
        %s315 = scalar_lea.vmem [#allocation3], %s314
        %p316 = pneg %p224
        %p317 = pneg %p221
        %s318 = sand.u32 %s211, 1
        %s319 = scalar_lea.sflag [#allocation6], %s318
        %s320 = sand.u32 %s211, 1
        %s321 = smul.addr %s320, 128
        %s322 = scalar_lea.vmem [#allocation5], %s321
        %p323 = scmp.lt.s32.totalorder %s29, 1
        %s324 = scalar_select %p323, %s29, 1
        %s325 = smul.addr %s324, 16
        %s326 = smul.addr %s325, 4
        %s327 = scalar_lea.vmem %s0, %s326
        %s328 = smul.u32 32, %s30
        %p329 = scmp.lt.s32.totalorder %s29, 1
        %s330 = scalar_select %p329, %s29, 1
        %p331 = scmp.lt.s32.totalorder %s328, 31
        %s332 = scalar_select %p331, %s328, 31
        %s333 = smul.addr %s330, 32
        %s334 = sadd.s32 %s332, %s333
        %s335 = smul.addr %s334, 8
        %s336 = scalar_lea.vmem %s1, %s335
        %s337 = smul.u32 32, %s30
        %s338 = smul.u32 32, %s30
        %p339 = scmp.eq.s32.totalorder %s30, 0
        // Predicated region
        $region45: #{tpu_custom_call.1} parent=43 // pred_check
          %p340 = pneg %p339
        $region46: #{tpu_custom_call.1} parent=43 // pred_check_branch
          %342 = sbr.rel (%p340) target = $region48
        $region47: #{tpu_custom_call.1} parent=43 // pred_region
          %v343 = vld [vmem:[%s327] sm:$0xf]
          %v344 = vld [vmem:[%s327 + $0x4] sm:$0xf]
          %v345 = vld [vmem:[%s327 + $0x8] sm:$0xf]
          %v346 = vld [vmem:[%s327 + $0xc] sm:$0xf]
          %v347 = vld [vmem:[%s327 + $0x10] sm:$0xf]
          %v348 = vld [vmem:[%s327 + $0x14] sm:$0xf]
          %v349 = vld [vmem:[%s327 + $0x18] sm:$0xf]
          %v350 = vld [vmem:[%s327 + $0x1c] sm:$0xf]
          %v351 = vld [vmem:[%s327 + $0x20] sm:$0xf]
          %v352 = vld [vmem:[%s327 + $0x24] sm:$0xf]
          %v353 = vld [vmem:[%s327 + $0x28] sm:$0xf]
          %v354 = vld [vmem:[%s327 + $0x2c] sm:$0xf]
          %v355 = vld [vmem:[%s327 + $0x30] sm:$0xf]
          %v356 = vld [vmem:[%s327 + $0x34] sm:$0xf]
          %v357 = vld [vmem:[%s327 + $0x38] sm:$0xf]
          %v358 = vld [vmem:[%s327 + $0x3c] sm:$0xf]
          %v359 = vld [vmem:[%s2] sm:$0xff]
          %v360 = vld [vmem:[%s2 + $0x8] sm:$0xff]
          %v361 = vld [vmem:[%s2 + $0x10] sm:$0xff]
          %v362 = vld [vmem:[%s2 + $0x18] sm:$0xff]
          %v363 = vld [vmem:[%s2 + $0x20] sm:$0xff]
          %v364 = vld [vmem:[%s2 + $0x28] sm:$0xff]
          %v365 = vld [vmem:[%s2 + $0x30] sm:$0xff]
          %v366 = vld [vmem:[%s2 + $0x38] sm:$0xff]
          %v367 = vld [vmem:[%s2 + $0x40] sm:$0xff]
          %v368 = vld [vmem:[%s2 + $0x48] sm:$0xff]
          %v369 = vld [vmem:[%s2 + $0x50] sm:$0xff]
          %v370 = vld [vmem:[%s2 + $0x58] sm:$0xff]
          %v371 = vld [vmem:[%s2 + $0x60] sm:$0xff]
          %v372 = vld [vmem:[%s2 + $0x68] sm:$0xff]
          %v373 = vld [vmem:[%s2 + $0x70] sm:$0xff]
          %v374 = vld [vmem:[%s2 + $0x78] sm:$0xff]
          %v375 = vld [vmem:[%s4] sm:$0x3]
          %v377 = vperm.slane %v375, 0
          %v378 = vperm.slane %v375, 1
          %v397 = vunpack.c.l.b16 %v343
          %v398 = vunpack.c.l.b16 %v344
          %v399 = vunpack.c.l.b16 %v345
          %v400 = vunpack.c.l.b16 %v346
          %v401 = vunpack.c.l.b16 %v347
          %v402 = vunpack.c.l.b16 %v348
          %v403 = vunpack.c.l.b16 %v349
          %v404 = vunpack.c.l.b16 %v350
          %v405 = vunpack.c.l.b16 %v351
          %v406 = vunpack.c.l.b16 %v352
          %v407 = vunpack.c.l.b16 %v353
          %v408 = vunpack.c.l.b16 %v354
          %v409 = vunpack.c.l.b16 %v355
          %v410 = vunpack.c.l.b16 %v356
          %v411 = vunpack.c.l.b16 %v357
          %v412 = vunpack.c.l.b16 %v358
          %v413 = vpack.c.b16 %v398, %v397
          %v414 = vpack.c.b16 %v400, %v399
          %v415 = vpack.c.b16 %v402, %v401
          %v416 = vpack.c.b16 %v404, %v403
          %v417 = vpack.c.b16 %v406, %v405
          %v418 = vpack.c.b16 %v408, %v407
          %v419 = vpack.c.b16 %v410, %v409
          %v420 = vpack.c.b16 %v412, %v411
          %v445 = vunpack.c.l.b16 %v359
          %v446 = vunpack.c.h.b16 %v359
          %v447 = vunpack.c.l.b16 %v360
          %v448 = vunpack.c.h.b16 %v360
          %v449 = vunpack.c.l.b16 %v361
          %v450 = vunpack.c.h.b16 %v361
          %v451 = vunpack.c.l.b16 %v362
          %v452 = vunpack.c.h.b16 %v362
          %v453 = vunpack.c.l.b16 %v363
          %v454 = vunpack.c.h.b16 %v363
          %v455 = vunpack.c.l.b16 %v364
          %v456 = vunpack.c.h.b16 %v364
          %v457 = vunpack.c.l.b16 %v365
          %v458 = vunpack.c.h.b16 %v365
          %v459 = vunpack.c.l.b16 %v366
          %v460 = vunpack.c.h.b16 %v366
          %v461 = vunpack.c.l.b16 %v367
          %v462 = vunpack.c.h.b16 %v367
          %v463 = vunpack.c.l.b16 %v368
          %v464 = vunpack.c.h.b16 %v368
          %v465 = vunpack.c.l.b16 %v369
          %v466 = vunpack.c.h.b16 %v369
          %v467 = vunpack.c.l.b16 %v370
          %v468 = vunpack.c.h.b16 %v370
          %v469 = vunpack.c.l.b16 %v371
          %v470 = vunpack.c.h.b16 %v371
          %v471 = vunpack.c.l.b16 %v372
          %v472 = vunpack.c.h.b16 %v372
          %v473 = vunpack.c.l.b16 %v373
          %v474 = vunpack.c.h.b16 %v373
          %v475 = vunpack.c.l.b16 %v374
          %v476 = vunpack.c.h.b16 %v374
          %v477 = vpack.c.b16 %v447, %v445
          %v478 = vpack.c.b16 %v448, %v446
          %v479 = vpack.c.b16 %v451, %v449
          %v480 = vpack.c.b16 %v452, %v450
          %v481 = vpack.c.b16 %v455, %v453
          %v482 = vpack.c.b16 %v456, %v454
          %v483 = vpack.c.b16 %v459, %v457
          %v484 = vpack.c.b16 %v460, %v458
          %v485 = vpack.c.b16 %v463, %v461
          %v486 = vpack.c.b16 %v464, %v462
          %v487 = vpack.c.b16 %v467, %v465
          %v488 = vpack.c.b16 %v468, %v466
          %v489 = vpack.c.b16 %v471, %v469
          %v490 = vpack.c.b16 %v472, %v470
          %v491 = vpack.c.b16 %v475, %v473
          %v492 = vpack.c.b16 %v476, %v474
          %509 = vmatpush.bf16.msra.mxu0 %v491
          %510 = vmatpush.bf16.msra.mxu0 %v489
          %511 = vmatpush.bf16.msra.mxu0 %v487
          %512 = vmatpush.bf16.msra.mxu0 %v485
          %513 = vmatpush.bf16.msra.mxu0 %v483
          %514 = vmatpush.bf16.msra.mxu0 %v481
          %515 = vmatpush.bf16.msra.mxu0 %v479
          %516 = vmatpush.bf16.msra.mxu0 %v477
          %517 = vmatmul.bf16.gmra.mxu0 %v413
          %v518 = vpop.f32.mrf.mxu0
          %v519 = vadd.f32 %v377, %v518
          %v520 = vpop.f32.mrf.mxu0
          %v521 = vadd.f32 %v377, %v520
          %522 = vmatmul.bf16.gmra.mxu0 %v414
          %v523 = vpop.f32.mrf.mxu0
          %v524 = vadd.f32 %v377, %v523
          %v525 = vpop.f32.mrf.mxu0
          %v526 = vadd.f32 %v377, %v525
          %527 = vmatmul.bf16.gmra.mxu0 %v415
          %v528 = vpop.f32.mrf.mxu0
          %v529 = vadd.f32 %v377, %v528
          %v530 = vpop.f32.mrf.mxu0
          %v531 = vadd.f32 %v377, %v530
          %532 = vmatmul.bf16.gmra.mxu0 %v416
          %v533 = vpop.f32.mrf.mxu0
          %v534 = vadd.f32 %v377, %v533
          %v535 = vpop.f32.mrf.mxu0
          %v536 = vadd.f32 %v377, %v535
          %537 = vmatmul.bf16.gmra.mxu0 %v417
          %v538 = vpop.f32.mrf.mxu0
          %v539 = vadd.f32 %v377, %v538
          %v540 = vpop.f32.mrf.mxu0
          %v541 = vadd.f32 %v377, %v540
          %542 = vmatmul.bf16.gmra.mxu0 %v418
          %v543 = vpop.f32.mrf.mxu0
          %v544 = vadd.f32 %v377, %v543
          %v545 = vpop.f32.mrf.mxu0
          %v546 = vadd.f32 %v377, %v545
          %547 = vmatmul.bf16.gmra.mxu0 %v419
          %v548 = vpop.f32.mrf.mxu0
          %v549 = vadd.f32 %v377, %v548
          %v550 = vpop.f32.mrf.mxu0
          %v551 = vadd.f32 %v377, %v550
          %552 = vmatmul.bf16.gmra.mxu0 %v420
          %v553 = vpop.f32.mrf.mxu0
          %v554 = vadd.f32 %v377, %v553
          %v555 = vpop.f32.mrf.mxu0
          %v556 = vadd.f32 %v377, %v555
          %557 = vdwg.mxu0
          %558 = vmatpush.bf16.msra.mxu0 %v492
          %559 = vmatpush.bf16.msra.mxu0 %v490
          %560 = vmatpush.bf16.msra.mxu0 %v488
          %561 = vmatpush.bf16.msra.mxu0 %v486
          %562 = vmatpush.bf16.msra.mxu0 %v484
          %563 = vmatpush.bf16.msra.mxu0 %v482
          %564 = vmatpush.bf16.msra.mxu0 %v480
          %565 = vmatpush.bf16.msra.mxu0 %v478
          %566 = vmatmul.bf16.gmra.mxu0 %v413
          %v567 = vpop.f32.mrf.mxu0
          %v568 = vadd.f32 %v378, %v567
          %v569 = vpop.f32.mrf.mxu0
          %v570 = vadd.f32 %v378, %v569
          %571 = vmatmul.bf16.gmra.mxu0 %v414
          %v572 = vpop.f32.mrf.mxu0
          %v573 = vadd.f32 %v378, %v572
          %v574 = vpop.f32.mrf.mxu0
          %v575 = vadd.f32 %v378, %v574
          %576 = vmatmul.bf16.gmra.mxu0 %v415
          %v577 = vpop.f32.mrf.mxu0
          %v578 = vadd.f32 %v378, %v577
          %v579 = vpop.f32.mrf.mxu0
          %v580 = vadd.f32 %v378, %v579
          %581 = vmatmul.bf16.gmra.mxu0 %v416
          %v582 = vpop.f32.mrf.mxu0
          %v583 = vadd.f32 %v378, %v582
          %v584 = vpop.f32.mrf.mxu0
          %v585 = vadd.f32 %v378, %v584
          %586 = vmatmul.bf16.gmra.mxu0 %v417
          %v587 = vpop.f32.mrf.mxu0
          %v588 = vadd.f32 %v378, %v587
          %v589 = vpop.f32.mrf.mxu0
          %v590 = vadd.f32 %v378, %v589
          %591 = vmatmul.bf16.gmra.mxu0 %v418
          %v592 = vpop.f32.mrf.mxu0
          %v593 = vadd.f32 %v378, %v592
          %v594 = vpop.f32.mrf.mxu0
          %v595 = vadd.f32 %v378, %v594
          %596 = vmatmul.bf16.gmra.mxu0 %v419
          %v597 = vpop.f32.mrf.mxu0
          %v598 = vadd.f32 %v378, %v597
          %v599 = vpop.f32.mrf.mxu0
          %v600 = vadd.f32 %v378, %v599
          %601 = vmatmul.bf16.gmra.mxu0 %v420
          %v602 = vpop.f32.mrf.mxu0
          %v603 = vadd.f32 %v378, %v602
          %v604 = vpop.f32.mrf.mxu0
          %v605 = vadd.f32 %v378, %v604
          %606 = vdwg.mxu0
          %v607 = vld [vmem:[%s3] sm:$0xff]
          %v608 = vld [vmem:[%s3 + $0x8] sm:$0xff]
          %v609 = vld [vmem:[%s3 + $0x10] sm:$0xff]
          %v610 = vld [vmem:[%s3 + $0x18] sm:$0xff]
          %v611 = vld [vmem:[%s3 + $0x20] sm:$0xff]
          %v612 = vld [vmem:[%s3 + $0x28] sm:$0xff]
          %v613 = vld [vmem:[%s3 + $0x30] sm:$0xff]
          %v614 = vld [vmem:[%s3 + $0x38] sm:$0xff]
          %v615 = vld [vmem:[%s3 + $0x40] sm:$0xff]
          %v616 = vld [vmem:[%s3 + $0x48] sm:$0xff]
          %v617 = vld [vmem:[%s3 + $0x50] sm:$0xff]
          %v618 = vld [vmem:[%s3 + $0x58] sm:$0xff]
          %v619 = vld [vmem:[%s3 + $0x60] sm:$0xff]
          %v620 = vld [vmem:[%s3 + $0x68] sm:$0xff]
          %v621 = vld [vmem:[%s3 + $0x70] sm:$0xff]
          %v622 = vld [vmem:[%s3 + $0x78] sm:$0xff]
          %v639 = vunpack.c.l.b16 %v607
          %v640 = vunpack.c.h.b16 %v607
          %v641 = vunpack.c.l.b16 %v608
          %v642 = vunpack.c.h.b16 %v608
          %v643 = vunpack.c.l.b16 %v609
          %v644 = vunpack.c.h.b16 %v609
          %v645 = vunpack.c.l.b16 %v610
          %v646 = vunpack.c.h.b16 %v610
          %v647 = vunpack.c.l.b16 %v611
          %v648 = vunpack.c.h.b16 %v611
          %v649 = vunpack.c.l.b16 %v612
          %v650 = vunpack.c.h.b16 %v612
          %v651 = vunpack.c.l.b16 %v613
          %v652 = vunpack.c.h.b16 %v613
          %v653 = vunpack.c.l.b16 %v614
          %v654 = vunpack.c.h.b16 %v614
          %v655 = vunpack.c.l.b16 %v615
          %v656 = vunpack.c.h.b16 %v615
          %v657 = vunpack.c.l.b16 %v616
          %v658 = vunpack.c.h.b16 %v616
          %v659 = vunpack.c.l.b16 %v617
          %v660 = vunpack.c.h.b16 %v617
          %v661 = vunpack.c.l.b16 %v618
          %v662 = vunpack.c.h.b16 %v618
          %v663 = vunpack.c.l.b16 %v619
          %v664 = vunpack.c.h.b16 %v619
          %v665 = vunpack.c.l.b16 %v620
          %v666 = vunpack.c.h.b16 %v620
          %v667 = vunpack.c.l.b16 %v621
          %v668 = vunpack.c.h.b16 %v621
          %v669 = vunpack.c.l.b16 %v622
          %v670 = vunpack.c.h.b16 %v622
          %v671 = vpack.c.b16 %v641, %v639
          %v672 = vpack.c.b16 %v642, %v640
          %v673 = vpack.c.b16 %v645, %v643
          %v674 = vpack.c.b16 %v646, %v644
          %v675 = vpack.c.b16 %v649, %v647
          %v676 = vpack.c.b16 %v650, %v648
          %v677 = vpack.c.b16 %v653, %v651
          %v678 = vpack.c.b16 %v654, %v652
          %v679 = vpack.c.b16 %v657, %v655
          %v680 = vpack.c.b16 %v658, %v656
          %v681 = vpack.c.b16 %v661, %v659
          %v682 = vpack.c.b16 %v662, %v660
          %v683 = vpack.c.b16 %v665, %v663
          %v684 = vpack.c.b16 %v666, %v664
          %v685 = vpack.c.b16 %v669, %v667
          %v686 = vpack.c.b16 %v670, %v668
          %703 = vmatpush.bf16.msra.mxu0 %v685
          %704 = vmatpush.bf16.msra.mxu0 %v683
          %705 = vmatpush.bf16.msra.mxu0 %v681
          %706 = vmatpush.bf16.msra.mxu0 %v679
          %707 = vmatpush.bf16.msra.mxu0 %v677
          %708 = vmatpush.bf16.msra.mxu0 %v675
          %709 = vmatpush.bf16.msra.mxu0 %v673
          %710 = vmatpush.bf16.msra.mxu0 %v671
          %711 = vmatmul.bf16.gmra.mxu0 %v413
          %v712 = vpop.f32.mrf.mxu0
          %v713 = vadd.f32 0.0, %v712
          %v714 = vpop.f32.mrf.mxu0
          %v715 = vadd.f32 0.0, %v714
          %716 = vmatmul.bf16.gmra.mxu0 %v414
          %v717 = vpop.f32.mrf.mxu0
          %v718 = vadd.f32 0.0, %v717
          %v719 = vpop.f32.mrf.mxu0
          %v720 = vadd.f32 0.0, %v719
          %721 = vmatmul.bf16.gmra.mxu0 %v415
          %v722 = vpop.f32.mrf.mxu0
          %v723 = vadd.f32 0.0, %v722
          %v724 = vpop.f32.mrf.mxu0
          %v725 = vadd.f32 0.0, %v724
          %726 = vmatmul.bf16.gmra.mxu0 %v416
          %v727 = vpop.f32.mrf.mxu0
          %v728 = vadd.f32 0.0, %v727
          %v729 = vpop.f32.mrf.mxu0
          %v730 = vadd.f32 0.0, %v729
          %731 = vmatmul.bf16.gmra.mxu0 %v417
          %v732 = vpop.f32.mrf.mxu0
          %v733 = vadd.f32 0.0, %v732
          %v734 = vpop.f32.mrf.mxu0
          %v735 = vadd.f32 0.0, %v734
          %736 = vmatmul.bf16.gmra.mxu0 %v418
          %v737 = vpop.f32.mrf.mxu0
          %v738 = vadd.f32 0.0, %v737
          %v739 = vpop.f32.mrf.mxu0
          %v740 = vadd.f32 0.0, %v739
          %741 = vmatmul.bf16.gmra.mxu0 %v419
          %v742 = vpop.f32.mrf.mxu0
          %v743 = vadd.f32 0.0, %v742
          %v744 = vpop.f32.mrf.mxu0
          %v745 = vadd.f32 0.0, %v744
          %746 = vmatmul.bf16.gmra.mxu0 %v420
          %v747 = vpop.f32.mrf.mxu0
          %v748 = vadd.f32 0.0, %v747
          %v749 = vpop.f32.mrf.mxu0
          %v750 = vadd.f32 0.0, %v749
          %751 = vdwg.mxu0
          %752 = vmatpush.bf16.msra.mxu0 %v686
          %753 = vmatpush.bf16.msra.mxu0 %v684
          %754 = vmatpush.bf16.msra.mxu0 %v682
          %755 = vmatpush.bf16.msra.mxu0 %v680
          %756 = vmatpush.bf16.msra.mxu0 %v678
          %757 = vmatpush.bf16.msra.mxu0 %v676
          %758 = vmatpush.bf16.msra.mxu0 %v674
          %759 = vmatpush.bf16.msra.mxu0 %v672
          %760 = vmatmul.bf16.gmra.mxu0 %v413
          %v761 = vpop.f32.mrf.mxu0
          %v762 = vadd.f32 0.0, %v761
          %v763 = vpop.f32.mrf.mxu0
          %v764 = vadd.f32 0.0, %v763
          %765 = vmatmul.bf16.gmra.mxu0 %v414
          %v766 = vpop.f32.mrf.mxu0
          %v767 = vadd.f32 0.0, %v766
          %v768 = vpop.f32.mrf.mxu0
          %v769 = vadd.f32 0.0, %v768
          %770 = vmatmul.bf16.gmra.mxu0 %v415
          %v771 = vpop.f32.mrf.mxu0
          %v772 = vadd.f32 0.0, %v771
          %v773 = vpop.f32.mrf.mxu0
          %v774 = vadd.f32 0.0, %v773
          %775 = vmatmul.bf16.gmra.mxu0 %v416
          %v776 = vpop.f32.mrf.mxu0
          %v777 = vadd.f32 0.0, %v776
          %v778 = vpop.f32.mrf.mxu0
          %v779 = vadd.f32 0.0, %v778
          %780 = vmatmul.bf16.gmra.mxu0 %v417
          %v781 = vpop.f32.mrf.mxu0
          %v782 = vadd.f32 0.0, %v781
          %v783 = vpop.f32.mrf.mxu0
          %v784 = vadd.f32 0.0, %v783
          %785 = vmatmul.bf16.gmra.mxu0 %v418
          %v786 = vpop.f32.mrf.mxu0
          %v787 = vadd.f32 0.0, %v786
          %v788 = vpop.f32.mrf.mxu0
          %v789 = vadd.f32 0.0, %v788
          %790 = vmatmul.bf16.gmra.mxu0 %v419
          %v791 = vpop.f32.mrf.mxu0
          %v792 = vadd.f32 0.0, %v791
          %v793 = vpop.f32.mrf.mxu0
          %v794 = vadd.f32 0.0, %v793
          %795 = vmatmul.bf16.gmra.mxu0 %v420
          %v796 = vpop.f32.mrf.mxu0
          %v797 = vadd.f32 0.0, %v796
          %v798 = vpop.f32.mrf.mxu0
          %v799 = vadd.f32 0.0, %v798
          %800 = vdwg.mxu0
          %v801 = vpack.c.bf16 %v568, %v519
          %v802 = vpack.c.bf16 %v570, %v521
          %v803 = vpack.c.bf16 %v573, %v524
          %v804 = vpack.c.bf16 %v575, %v526
          %v805 = vpack.c.bf16 %v578, %v529
          %v806 = vpack.c.bf16 %v580, %v531
          %v807 = vpack.c.bf16 %v583, %v534
          %v808 = vpack.c.bf16 %v585, %v536
          %v809 = vpack.c.bf16 %v588, %v539
          %v810 = vpack.c.bf16 %v590, %v541
          %v811 = vpack.c.bf16 %v593, %v544
          %v812 = vpack.c.bf16 %v595, %v546
          %v813 = vpack.c.bf16 %v598, %v549
          %v814 = vpack.c.bf16 %v600, %v551
          %v815 = vpack.c.bf16 %v603, %v554
          %v816 = vpack.c.bf16 %v605, %v556
          %817 = vst [vmem:[#allocation2] sm:$0xff] %v801
          %818 = vst [vmem:[#allocation2 + $0x8] sm:$0xff] %v802
          %819 = vst [vmem:[#allocation2 + $0x10] sm:$0xff] %v803
          %820 = vst [vmem:[#allocation2 + $0x18] sm:$0xff] %v804
          %821 = vst [vmem:[#allocation2 + $0x20] sm:$0xff] %v805
          %822 = vst [vmem:[#allocation2 + $0x28] sm:$0xff] %v806
          %823 = vst [vmem:[#allocation2 + $0x30] sm:$0xff] %v807
          %824 = vst [vmem:[#allocation2 + $0x38] sm:$0xff] %v808
          %825 = vst [vmem:[#allocation2 + $0x40] sm:$0xff] %v809
          %826 = vst [vmem:[#allocation2 + $0x48] sm:$0xff] %v810
          %827 = vst [vmem:[#allocation2 + $0x50] sm:$0xff] %v811
          %828 = vst [vmem:[#allocation2 + $0x58] sm:$0xff] %v812
          %829 = vst [vmem:[#allocation2 + $0x60] sm:$0xff] %v813
          %830 = vst [vmem:[#allocation2 + $0x68] sm:$0xff] %v814
          %831 = vst [vmem:[#allocation2 + $0x70] sm:$0xff] %v815
          %832 = vst [vmem:[#allocation2 + $0x78] sm:$0xff] %v816
          %v833 = vpack.c.bf16 %v762, %v713
          %v834 = vpack.c.bf16 %v764, %v715
          %v835 = vpack.c.bf16 %v767, %v718
          %v836 = vpack.c.bf16 %v769, %v720
          %v837 = vpack.c.bf16 %v772, %v723
          %v838 = vpack.c.bf16 %v774, %v725
          %v839 = vpack.c.bf16 %v777, %v728
          %v840 = vpack.c.bf16 %v779, %v730
          %v841 = vpack.c.bf16 %v782, %v733
          %v842 = vpack.c.bf16 %v784, %v735
          %v843 = vpack.c.bf16 %v787, %v738
          %v844 = vpack.c.bf16 %v789, %v740
          %v845 = vpack.c.bf16 %v792, %v743
          %v846 = vpack.c.bf16 %v794, %v745
          %v847 = vpack.c.bf16 %v797, %v748
          %v848 = vpack.c.bf16 %v799, %v750
          %849 = vst [vmem:[#allocation2 + $0x80] sm:$0xff] %v833
          %850 = vst [vmem:[#allocation2 + $0x88] sm:$0xff] %v834
          %851 = vst [vmem:[#allocation2 + $0x90] sm:$0xff] %v835
          %852 = vst [vmem:[#allocation2 + $0x98] sm:$0xff] %v836
          %853 = vst [vmem:[#allocation2 + $0xa0] sm:$0xff] %v837
          %854 = vst [vmem:[#allocation2 + $0xa8] sm:$0xff] %v838
          %855 = vst [vmem:[#allocation2 + $0xb0] sm:$0xff] %v839
          %856 = vst [vmem:[#allocation2 + $0xb8] sm:$0xff] %v840
          %857 = vst [vmem:[#allocation2 + $0xc0] sm:$0xff] %v841
          %858 = vst [vmem:[#allocation2 + $0xc8] sm:$0xff] %v842
          %859 = vst [vmem:[#allocation2 + $0xd0] sm:$0xff] %v843
          %860 = vst [vmem:[#allocation2 + $0xd8] sm:$0xff] %v844
          %861 = vst [vmem:[#allocation2 + $0xe0] sm:$0xff] %v845
          %862 = vst [vmem:[#allocation2 + $0xe8] sm:$0xff] %v846
          %863 = vst [vmem:[#allocation2 + $0xf0] sm:$0xff] %v847
          %864 = vst [vmem:[#allocation2 + $0xf8] sm:$0xff] %v848
          %v865 = vpack.c.bf16 %v568, %v568
          %v866 = vpack.c.bf16 %v570, %v570
          %v867 = vpack.c.bf16 %v573, %v573
          %v868 = vpack.c.bf16 %v575, %v575
          %v869 = vpack.c.bf16 %v578, %v578
          %v870 = vpack.c.bf16 %v580, %v580
          %v871 = vpack.c.bf16 %v583, %v583
          %v872 = vpack.c.bf16 %v585, %v585
          %v873 = vpack.c.bf16 %v588, %v588
          %v874 = vpack.c.bf16 %v590, %v590
          %v875 = vpack.c.bf16 %v593, %v593
          %v876 = vpack.c.bf16 %v595, %v595
          %v877 = vpack.c.bf16 %v598, %v598
          %v878 = vpack.c.bf16 %v600, %v600
          %v879 = vpack.c.bf16 %v603, %v603
          %v880 = vpack.c.bf16 %v605, %v605
          %881 = vst [vmem:[%s315] sm:$0xf] %v865
          %882 = vst [vmem:[%s315 + $0x4] sm:$0xf] %v866
          %883 = vst [vmem:[%s315 + $0x8] sm:$0xf] %v867
          %884 = vst [vmem:[%s315 + $0xc] sm:$0xf] %v868
          %885 = vst [vmem:[%s315 + $0x10] sm:$0xf] %v869
          %886 = vst [vmem:[%s315 + $0x14] sm:$0xf] %v870
          %887 = vst [vmem:[%s315 + $0x18] sm:$0xf] %v871
          %888 = vst [vmem:[%s315 + $0x1c] sm:$0xf] %v872
          %889 = vst [vmem:[%s315 + $0x20] sm:$0xf] %v873
          %890 = vst [vmem:[%s315 + $0x24] sm:$0xf] %v874
          %891 = vst [vmem:[%s315 + $0x28] sm:$0xf] %v875
          %892 = vst [vmem:[%s315 + $0x2c] sm:$0xf] %v876
          %893 = vst [vmem:[%s315 + $0x30] sm:$0xf] %v877
          %894 = vst [vmem:[%s315 + $0x34] sm:$0xf] %v878
          %895 = vst [vmem:[%s315 + $0x38] sm:$0xf] %v879
          %896 = vst [vmem:[%s315 + $0x3c] sm:$0xf] %v880
        $region48: #{tpu_custom_call.1} parent=43 // pred_fallthru
          _
        %v897 = vld [vmem:[%s336] sm:$0xff]
        %v898 = vld [vmem:[%s336 + $0x8] sm:$0xff]
        %v899 = vld [vmem:[%s336 + $0x10] sm:$0xff]
        %v900 = vld [vmem:[%s336 + $0x18] sm:$0xff]
        %v901 = vld [vmem:[%s336 + $0x20] sm:$0xff]
        %v902 = vld [vmem:[%s336 + $0x28] sm:$0xff]
        %v903 = vld [vmem:[%s336 + $0x30] sm:$0xff]
        %v904 = vld [vmem:[%s336 + $0x38] sm:$0xff]
        %v905 = vld [vmem:[%s336 + $0x40] sm:$0xff]
        %v906 = vld [vmem:[%s336 + $0x48] sm:$0xff]
        %v907 = vld [vmem:[%s336 + $0x50] sm:$0xff]
        %v908 = vld [vmem:[%s336 + $0x58] sm:$0xff]
        %v909 = vld [vmem:[%s336 + $0x60] sm:$0xff]
        %v910 = vld [vmem:[%s336 + $0x68] sm:$0xff]
        %v911 = vld [vmem:[%s336 + $0x70] sm:$0xff]
        %v912 = vld [vmem:[%s336 + $0x78] sm:$0xff]
        %v913 = vld [vmem:[%s336 + $0x80] sm:$0xff]
        %v914 = vld [vmem:[%s336 + $0x88] sm:$0xff]
        %v915 = vld [vmem:[%s336 + $0x90] sm:$0xff]
        %v916 = vld [vmem:[%s336 + $0x98] sm:$0xff]
        %v917 = vld [vmem:[%s336 + $0xa0] sm:$0xff]
        %v918 = vld [vmem:[%s336 + $0xa8] sm:$0xff]
        %v919 = vld [vmem:[%s336 + $0xb0] sm:$0xff]
        %v920 = vld [vmem:[%s336 + $0xb8] sm:$0xff]
        %v921 = vld [vmem:[%s336 + $0xc0] sm:$0xff]
        %v922 = vld [vmem:[%s336 + $0xc8] sm:$0xff]
        %v923 = vld [vmem:[%s336 + $0xd0] sm:$0xff]
        %v924 = vld [vmem:[%s336 + $0xd8] sm:$0xff]
        %v925 = vld [vmem:[%s336 + $0xe0] sm:$0xff]
        %v926 = vld [vmem:[%s336 + $0xe8] sm:$0xff]
        %v927 = vld [vmem:[%s336 + $0xf0] sm:$0xff]
        %v928 = vld [vmem:[%s336 + $0xf8] sm:$0xff]
        %v929 = vlaneseq
        %v930 = vand.u32 %v929, 127
        %v931 = vadd.s32 %v930, 128
        %932 = vset.pattern.permute.xlu0 0
        %933 = vperm.xlu0 %932, %v897
        %v934 = vpop.permute.xlu0 %933
        %935 = vset.pattern.permute.xlu0 0
        %936 = vperm.xlu0 %935, %v898
        %v937 = vpop.permute.xlu0 %936
        %938 = vset.pattern.permute.xlu0 0
        %939 = vperm.xlu0 %938, %v899
        %v940 = vpop.permute.xlu0 %939
        %941 = vset.pattern.permute.xlu0 0
        %942 = vperm.xlu0 %941, %v900
        %v943 = vpop.permute.xlu0 %942
        %944 = vset.pattern.permute.xlu0 0
        %945 = vperm.xlu0 %944, %v901
        %v946 = vpop.permute.xlu0 %945
        %947 = vset.pattern.permute.xlu0 0
        %948 = vperm.xlu0 %947, %v902
        %v949 = vpop.permute.xlu0 %948
        %950 = vset.pattern.permute.xlu0 0
        %951 = vperm.xlu0 %950, %v903
        %v952 = vpop.permute.xlu0 %951
        %953 = vset.pattern.permute.xlu0 0
        %954 = vperm.xlu0 %953, %v904
        %v955 = vpop.permute.xlu0 %954
        %956 = vset.pattern.permute.xlu0 0
        %957 = vperm.xlu0 %956, %v905
        %v958 = vpop.permute.xlu0 %957
        %959 = vset.pattern.permute.xlu0 0
        %960 = vperm.xlu0 %959, %v906
        %v961 = vpop.permute.xlu0 %960
        %962 = vset.pattern.permute.xlu0 0
        %963 = vperm.xlu0 %962, %v907
        %v964 = vpop.permute.xlu0 %963
        %965 = vset.pattern.permute.xlu0 0
        %966 = vperm.xlu0 %965, %v908
        %v967 = vpop.permute.xlu0 %966
        %968 = vset.pattern.permute.xlu0 0
        %969 = vperm.xlu0 %968, %v909
        %v970 = vpop.permute.xlu0 %969
        %971 = vset.pattern.permute.xlu0 0
        %972 = vperm.xlu0 %971, %v910
        %v973 = vpop.permute.xlu0 %972
        %974 = vset.pattern.permute.xlu0 0
        %975 = vperm.xlu0 %974, %v911
        %v976 = vpop.permute.xlu0 %975
        %977 = vset.pattern.permute.xlu0 0
        %978 = vperm.xlu0 %977, %v912
        %v979 = vpop.permute.xlu0 %978
        %980 = vset.pattern.permute.xlu0 0
        %981 = vperm.xlu0 %980, %v913
        %v982 = vpop.permute.xlu0 %981
        %983 = vset.pattern.permute.xlu0 0
        %984 = vperm.xlu0 %983, %v914
        %v985 = vpop.permute.xlu0 %984
        %986 = vset.pattern.permute.xlu0 0
        %987 = vperm.xlu0 %986, %v915
        %v988 = vpop.permute.xlu0 %987
        %989 = vset.pattern.permute.xlu0 0
        %990 = vperm.xlu0 %989, %v916
        %v991 = vpop.permute.xlu0 %990
        %992 = vset.pattern.permute.xlu0 0
        %993 = vperm.xlu0 %992, %v917
        %v994 = vpop.permute.xlu0 %993
        %995 = vset.pattern.permute.xlu0 0
        %996 = vperm.xlu0 %995, %v918
        %v997 = vpop.permute.xlu0 %996
        %998 = vset.pattern.permute.xlu0 0
        %999 = vperm.xlu0 %998, %v919
        %v1000 = vpop.permute.xlu0 %999
        %1001 = vset.pattern.permute.xlu0 0
        %1002 = vperm.xlu0 %1001, %v920
        %v1003 = vpop.permute.xlu0 %1002
        %1004 = vset.pattern.permute.xlu0 0
        %1005 = vperm.xlu0 %1004, %v921
        %v1006 = vpop.permute.xlu0 %1005
        %1007 = vset.pattern.permute.xlu0 0
        %1008 = vperm.xlu0 %1007, %v922
        %v1009 = vpop.permute.xlu0 %1008
        %1010 = vset.pattern.permute.xlu0 0
        %1011 = vperm.xlu0 %1010, %v923
        %v1012 = vpop.permute.xlu0 %1011
        %1013 = vset.pattern.permute.xlu0 0
        %1014 = vperm.xlu0 %1013, %v924
        %v1015 = vpop.permute.xlu0 %1014
        %1016 = vset.pattern.permute.xlu0 0
        %1017 = vperm.xlu0 %1016, %v925
        %v1018 = vpop.permute.xlu0 %1017
        %1019 = vset.pattern.permute.xlu0 0
        %1020 = vperm.xlu0 %1019, %v926
        %v1021 = vpop.permute.xlu0 %1020
        %1022 = vset.pattern.permute.xlu0 0
        %1023 = vperm.xlu0 %1022, %v927
        %v1024 = vpop.permute.xlu0 %1023
        %1025 = vset.pattern.permute.xlu0 0
        %1026 = vperm.xlu0 %1025, %v928
        %v1027 = vpop.permute.xlu0 %1026
        %vm1028 = vcmp.eq.s32.totalorder %v930, %v934
        %vm1029 = vcmp.eq.s32.totalorder %v931, %v934
        %vm1030 = vcmp.eq.s32.totalorder %v930, %v937
        %vm1031 = vcmp.eq.s32.totalorder %v931, %v937
        %vm1032 = vcmp.eq.s32.totalorder %v930, %v940
        %vm1033 = vcmp.eq.s32.totalorder %v931, %v940
        %vm1034 = vcmp.eq.s32.totalorder %v930, %v943
        %vm1035 = vcmp.eq.s32.totalorder %v931, %v943
        %vm1036 = vcmp.eq.s32.totalorder %v930, %v946
        %vm1037 = vcmp.eq.s32.totalorder %v931, %v946
        %vm1038 = vcmp.eq.s32.totalorder %v930, %v949
        %vm1039 = vcmp.eq.s32.totalorder %v931, %v949
        %vm1040 = vcmp.eq.s32.totalorder %v930, %v952
        %vm1041 = vcmp.eq.s32.totalorder %v931, %v952
        %vm1042 = vcmp.eq.s32.totalorder %v930, %v955
        %vm1043 = vcmp.eq.s32.totalorder %v931, %v955
        %vm1044 = vcmp.eq.s32.totalorder %v930, %v958
        %vm1045 = vcmp.eq.s32.totalorder %v931, %v958
        %vm1046 = vcmp.eq.s32.totalorder %v930, %v961
        %vm1047 = vcmp.eq.s32.totalorder %v931, %v961
        %vm1048 = vcmp.eq.s32.totalorder %v930, %v964
        %vm1049 = vcmp.eq.s32.totalorder %v931, %v964
        %vm1050 = vcmp.eq.s32.totalorder %v930, %v967
        %vm1051 = vcmp.eq.s32.totalorder %v931, %v967
        %vm1052 = vcmp.eq.s32.totalorder %v930, %v970
        %vm1053 = vcmp.eq.s32.totalorder %v931, %v970
        %vm1054 = vcmp.eq.s32.totalorder %v930, %v973
        %vm1055 = vcmp.eq.s32.totalorder %v931, %v973
        %vm1056 = vcmp.eq.s32.totalorder %v930, %v976
        %vm1057 = vcmp.eq.s32.totalorder %v931, %v976
        %vm1058 = vcmp.eq.s32.totalorder %v930, %v979
        %vm1059 = vcmp.eq.s32.totalorder %v931, %v979
        %vm1060 = vcmp.eq.s32.totalorder %v930, %v982
        %vm1061 = vcmp.eq.s32.totalorder %v931, %v982
        %vm1062 = vcmp.eq.s32.totalorder %v930, %v985
        %vm1063 = vcmp.eq.s32.totalorder %v931, %v985
        %vm1064 = vcmp.eq.s32.totalorder %v930, %v988
        %vm1065 = vcmp.eq.s32.totalorder %v931, %v988
        %vm1066 = vcmp.eq.s32.totalorder %v930, %v991
        %vm1067 = vcmp.eq.s32.totalorder %v931, %v991
        %vm1068 = vcmp.eq.s32.totalorder %v930, %v994
        %vm1069 = vcmp.eq.s32.totalorder %v931, %v994
        %vm1070 = vcmp.eq.s32.totalorder %v930, %v997
        %vm1071 = vcmp.eq.s32.totalorder %v931, %v997
        %vm1072 = vcmp.eq.s32.totalorder %v930, %v1000
        %vm1073 = vcmp.eq.s32.totalorder %v931, %v1000
        %vm1074 = vcmp.eq.s32.totalorder %v930, %v1003
        %vm1075 = vcmp.eq.s32.totalorder %v931, %v1003
        %vm1076 = vcmp.eq.s32.totalorder %v930, %v1006
        %vm1077 = vcmp.eq.s32.totalorder %v931, %v1006
        %vm1078 = vcmp.eq.s32.totalorder %v930, %v1009
        %vm1079 = vcmp.eq.s32.totalorder %v931, %v1009
        %vm1080 = vcmp.eq.s32.totalorder %v930, %v1012
        %vm1081 = vcmp.eq.s32.totalorder %v931, %v1012
        %vm1082 = vcmp.eq.s32.totalorder %v930, %v1015
        %vm1083 = vcmp.eq.s32.totalorder %v931, %v1015
        %vm1084 = vcmp.eq.s32.totalorder %v930, %v1018
        %vm1085 = vcmp.eq.s32.totalorder %v931, %v1018
        %vm1086 = vcmp.eq.s32.totalorder %v930, %v1021
        %vm1087 = vcmp.eq.s32.totalorder %v931, %v1021
        %vm1088 = vcmp.eq.s32.totalorder %v930, %v1024
        %vm1089 = vcmp.eq.s32.totalorder %v931, %v1024
        %vm1090 = vcmp.eq.s32.totalorder %v930, %v1027
        %vm1091 = vcmp.eq.s32.totalorder %v931, %v1027
        %1092 = vset.pattern.permute.xlu0 1
        %1093 = vperm.xlu0 %1092, %v897
        %v1094 = vpop.permute.xlu0 %1093
        %1095 = vset.pattern.permute.xlu0 1
        %1096 = vperm.xlu0 %1095, %v898
        %v1097 = vpop.permute.xlu0 %1096
        %1098 = vset.pattern.permute.xlu0 1
        %1099 = vperm.xlu0 %1098, %v899
        %v1100 = vpop.permute.xlu0 %1099
        %1101 = vset.pattern.permute.xlu0 1
        %1102 = vperm.xlu0 %1101, %v900
        %v1103 = vpop.permute.xlu0 %1102
        %1104 = vset.pattern.permute.xlu0 1
        %1105 = vperm.xlu0 %1104, %v901
        %v1106 = vpop.permute.xlu0 %1105
        %1107 = vset.pattern.permute.xlu0 1
        %1108 = vperm.xlu0 %1107, %v902
        %v1109 = vpop.permute.xlu0 %1108
        %1110 = vset.pattern.permute.xlu0 1
        %1111 = vperm.xlu0 %1110, %v903
        %v1112 = vpop.permute.xlu0 %1111
        %1113 = vset.pattern.permute.xlu0 1
        %1114 = vperm.xlu0 %1113, %v904
        %v1115 = vpop.permute.xlu0 %1114
        %1116 = vset.pattern.permute.xlu0 1
        %1117 = vperm.xlu0 %1116, %v905
        %v1118 = vpop.permute.xlu0 %1117
        %1119 = vset.pattern.permute.xlu0 1
        %1120 = vperm.xlu0 %1119, %v906
        %v1121 = vpop.permute.xlu0 %1120
        %1122 = vset.pattern.permute.xlu0 1
        %1123 = vperm.xlu0 %1122, %v907
        %v1124 = vpop.permute.xlu0 %1123
        %1125 = vset.pattern.permute.xlu0 1
        %1126 = vperm.xlu0 %1125, %v908
        %v1127 = vpop.permute.xlu0 %1126
        %1128 = vset.pattern.permute.xlu0 1
        %1129 = vperm.xlu0 %1128, %v909
        %v1130 = vpop.permute.xlu0 %1129
        %1131 = vset.pattern.permute.xlu0 1
        %1132 = vperm.xlu0 %1131, %v910
        %v1133 = vpop.permute.xlu0 %1132
        %1134 = vset.pattern.permute.xlu0 1
        %1135 = vperm.xlu0 %1134, %v911
        %v1136 = vpop.permute.xlu0 %1135
        %1137 = vset.pattern.permute.xlu0 1
        %1138 = vperm.xlu0 %1137, %v912
        %v1139 = vpop.permute.xlu0 %1138
        %1140 = vset.pattern.permute.xlu0 1
        %1141 = vperm.xlu0 %1140, %v913
        %v1142 = vpop.permute.xlu0 %1141
        %1143 = vset.pattern.permute.xlu0 1
        %1144 = vperm.xlu0 %1143, %v914
        %v1145 = vpop.permute.xlu0 %1144
        %1146 = vset.pattern.permute.xlu0 1
        %1147 = vperm.xlu0 %1146, %v915
        %v1148 = vpop.permute.xlu0 %1147
        %1149 = vset.pattern.permute.xlu0 1
        %1150 = vperm.xlu0 %1149, %v916
        %v1151 = vpop.permute.xlu0 %1150
        %1152 = vset.pattern.permute.xlu0 1
        %1153 = vperm.xlu0 %1152, %v917
        %v1154 = vpop.permute.xlu0 %1153
        %1155 = vset.pattern.permute.xlu0 1
        %1156 = vperm.xlu0 %1155, %v918
        %v1157 = vpop.permute.xlu0 %1156
        %1158 = vset.pattern.permute.xlu0 1
        %1159 = vperm.xlu0 %1158, %v919
        %v1160 = vpop.permute.xlu0 %1159
        %1161 = vset.pattern.permute.xlu0 1
        %1162 = vperm.xlu0 %1161, %v920
        %v1163 = vpop.permute.xlu0 %1162
        %1164 = vset.pattern.permute.xlu0 1
        %1165 = vperm.xlu0 %1164, %v921
        %v1166 = vpop.permute.xlu0 %1165
        %1167 = vset.pattern.permute.xlu0 1
        %1168 = vperm.xlu0 %1167, %v922
        %v1169 = vpop.permute.xlu0 %1168
        %1170 = vset.pattern.permute.xlu0 1
        %1171 = vperm.xlu0 %1170, %v923
        %v1172 = vpop.permute.xlu0 %1171
        %1173 = vset.pattern.permute.xlu0 1
        %1174 = vperm.xlu0 %1173, %v924
        %v1175 = vpop.permute.xlu0 %1174
        %1176 = vset.pattern.permute.xlu0 1
        %1177 = vperm.xlu0 %1176, %v925
        %v1178 = vpop.permute.xlu0 %1177
        %1179 = vset.pattern.permute.xlu0 1
        %1180 = vperm.xlu0 %1179, %v926
        %v1181 = vpop.permute.xlu0 %1180
        %1182 = vset.pattern.permute.xlu0 1
        %1183 = vperm.xlu0 %1182, %v927
        %v1184 = vpop.permute.xlu0 %1183
        %1185 = vset.pattern.permute.xlu0 1
        %1186 = vperm.xlu0 %1185, %v928
        %v1187 = vpop.permute.xlu0 %1186
        %vm1188 = vcmp.eq.s32.totalorder %v930, %v1094
        %vm1189 = vcmp.eq.s32.totalorder %v931, %v1094
        %vm1190 = vcmp.eq.s32.totalorder %v930, %v1097
        %vm1191 = vcmp.eq.s32.totalorder %v931, %v1097
        %vm1192 = vcmp.eq.s32.totalorder %v930, %v1100
        %vm1193 = vcmp.eq.s32.totalorder %v931, %v1100
        %vm1194 = vcmp.eq.s32.totalorder %v930, %v1103
        %vm1195 = vcmp.eq.s32.totalorder %v931, %v1103
        %vm1196 = vcmp.eq.s32.totalorder %v930, %v1106
        %vm1197 = vcmp.eq.s32.totalorder %v931, %v1106
        %vm1198 = vcmp.eq.s32.totalorder %v930, %v1109
        %vm1199 = vcmp.eq.s32.totalorder %v931, %v1109
        %vm1200 = vcmp.eq.s32.totalorder %v930, %v1112
        %vm1201 = vcmp.eq.s32.totalorder %v931, %v1112
        %vm1202 = vcmp.eq.s32.totalorder %v930, %v1115
        %vm1203 = vcmp.eq.s32.totalorder %v931, %v1115
        %vm1204 = vcmp.eq.s32.totalorder %v930, %v1118
        %vm1205 = vcmp.eq.s32.totalorder %v931, %v1118
        %vm1206 = vcmp.eq.s32.totalorder %v930, %v1121
        %vm1207 = vcmp.eq.s32.totalorder %v931, %v1121
        %vm1208 = vcmp.eq.s32.totalorder %v930, %v1124
        %vm1209 = vcmp.eq.s32.totalorder %v931, %v1124
        %vm1210 = vcmp.eq.s32.totalorder %v930, %v1127
        %vm1211 = vcmp.eq.s32.totalorder %v931, %v1127
        %vm1212 = vcmp.eq.s32.totalorder %v930, %v1130
        %vm1213 = vcmp.eq.s32.totalorder %v931, %v1130
        %vm1214 = vcmp.eq.s32.totalorder %v930, %v1133
        %vm1215 = vcmp.eq.s32.totalorder %v931, %v1133
        %vm1216 = vcmp.eq.s32.totalorder %v930, %v1136
        %vm1217 = vcmp.eq.s32.totalorder %v931, %v1136
        %vm1218 = vcmp.eq.s32.totalorder %v930, %v1139
        %vm1219 = vcmp.eq.s32.totalorder %v931, %v1139
        %vm1220 = vcmp.eq.s32.totalorder %v930, %v1142
        %vm1221 = vcmp.eq.s32.totalorder %v931, %v1142
        %vm1222 = vcmp.eq.s32.totalorder %v930, %v1145
        %vm1223 = vcmp.eq.s32.totalorder %v931, %v1145
        %vm1224 = vcmp.eq.s32.totalorder %v930, %v1148
        %vm1225 = vcmp.eq.s32.totalorder %v931, %v1148
        %vm1226 = vcmp.eq.s32.totalorder %v930, %v1151
        %vm1227 = vcmp.eq.s32.totalorder %v931, %v1151
        %vm1228 = vcmp.eq.s32.totalorder %v930, %v1154
        %vm1229 = vcmp.eq.s32.totalorder %v931, %v1154
        %vm1230 = vcmp.eq.s32.totalorder %v930, %v1157
        %vm1231 = vcmp.eq.s32.totalorder %v931, %v1157
        %vm1232 = vcmp.eq.s32.totalorder %v930, %v1160
        %vm1233 = vcmp.eq.s32.totalorder %v931, %v1160
        %vm1234 = vcmp.eq.s32.totalorder %v930, %v1163
        %vm1235 = vcmp.eq.s32.totalorder %v931, %v1163
        %vm1236 = vcmp.eq.s32.totalorder %v930, %v1166
        %vm1237 = vcmp.eq.s32.totalorder %v931, %v1166
        %vm1238 = vcmp.eq.s32.totalorder %v930, %v1169
        %vm1239 = vcmp.eq.s32.totalorder %v931, %v1169
        %vm1240 = vcmp.eq.s32.totalorder %v930, %v1172
        %vm1241 = vcmp.eq.s32.totalorder %v931, %v1172
        %vm1242 = vcmp.eq.s32.totalorder %v930, %v1175
        %vm1243 = vcmp.eq.s32.totalorder %v931, %v1175
        %vm1244 = vcmp.eq.s32.totalorder %v930, %v1178
        %vm1245 = vcmp.eq.s32.totalorder %v931, %v1178
        %vm1246 = vcmp.eq.s32.totalorder %v930, %v1181
        %vm1247 = vcmp.eq.s32.totalorder %v931, %v1181
        %vm1248 = vcmp.eq.s32.totalorder %v930, %v1184
        %vm1249 = vcmp.eq.s32.totalorder %v931, %v1184
        %vm1250 = vcmp.eq.s32.totalorder %v930, %v1187
        %vm1251 = vcmp.eq.s32.totalorder %v931, %v1187
        %vm1252 = vmor %vm1028, %vm1188
        %vm1253 = vmor %vm1029, %vm1189
        %vm1254 = vmor %vm1030, %vm1190
        %vm1255 = vmor %vm1031, %vm1191
        %vm1256 = vmor %vm1032, %vm1192
        %vm1257 = vmor %vm1033, %vm1193
        %vm1258 = vmor %vm1034, %vm1194
        %vm1259 = vmor %vm1035, %vm1195
        %vm1260 = vmor %vm1036, %vm1196
        %vm1261 = vmor %vm1037, %vm1197
        %vm1262 = vmor %vm1038, %vm1198
        %vm1263 = vmor %vm1039, %vm1199
        %vm1264 = vmor %vm1040, %vm1200
        %vm1265 = vmor %vm1041, %vm1201
        %vm1266 = vmor %vm1042, %vm1202
        %vm1267 = vmor %vm1043, %vm1203
        %vm1268 = vmor %vm1044, %vm1204
        %vm1269 = vmor %vm1045, %vm1205
        %vm1270 = vmor %vm1046, %vm1206
        %vm1271 = vmor %vm1047, %vm1207
        %vm1272 = vmor %vm1048, %vm1208
        %vm1273 = vmor %vm1049, %vm1209
        %vm1274 = vmor %vm1050, %vm1210
        %vm1275 = vmor %vm1051, %vm1211
        %vm1276 = vmor %vm1052, %vm1212
        %vm1277 = vmor %vm1053, %vm1213
        %vm1278 = vmor %vm1054, %vm1214
        %vm1279 = vmor %vm1055, %vm1215
        %vm1280 = vmor %vm1056, %vm1216
        %vm1281 = vmor %vm1057, %vm1217
        %vm1282 = vmor %vm1058, %vm1218
        %vm1283 = vmor %vm1059, %vm1219
        %vm1284 = vmor %vm1060, %vm1220
        %vm1285 = vmor %vm1061, %vm1221
        %vm1286 = vmor %vm1062, %vm1222
        %vm1287 = vmor %vm1063, %vm1223
        %vm1288 = vmor %vm1064, %vm1224
        %vm1289 = vmor %vm1065, %vm1225
        %vm1290 = vmor %vm1066, %vm1226
        %vm1291 = vmor %vm1067, %vm1227
        %vm1292 = vmor %vm1068, %vm1228
        %vm1293 = vmor %vm1069, %vm1229
        %vm1294 = vmor %vm1070, %vm1230
        %vm1295 = vmor %vm1071, %vm1231
        %vm1296 = vmor %vm1072, %vm1232
        %vm1297 = vmor %vm1073, %vm1233
        %vm1298 = vmor %vm1074, %vm1234
        %vm1299 = vmor %vm1075, %vm1235
        %vm1300 = vmor %vm1076, %vm1236
        %vm1301 = vmor %vm1077, %vm1237
        %vm1302 = vmor %vm1078, %vm1238
        %vm1303 = vmor %vm1079, %vm1239
        %vm1304 = vmor %vm1080, %vm1240
        %vm1305 = vmor %vm1081, %vm1241
        %vm1306 = vmor %vm1082, %vm1242
        %vm1307 = vmor %vm1083, %vm1243
        %vm1308 = vmor %vm1084, %vm1244
        %vm1309 = vmor %vm1085, %vm1245
        %vm1310 = vmor %vm1086, %vm1246
        %vm1311 = vmor %vm1087, %vm1247
        %vm1312 = vmor %vm1088, %vm1248
        %vm1313 = vmor %vm1089, %vm1249
        %vm1314 = vmor %vm1090, %vm1250
        %vm1315 = vmor %vm1091, %vm1251
        %v1316 = vsel %vm1252, 1, 0
        %v1317 = vsel %vm1253, 1, 0
        %v1318 = vsel %vm1254, 1, 0
        %v1319 = vsel %vm1255, 1, 0
        %v1320 = vsel %vm1256, 1, 0
        %v1321 = vsel %vm1257, 1, 0
        %v1322 = vsel %vm1258, 1, 0
        %v1323 = vsel %vm1259, 1, 0
        %v1324 = vsel %vm1260, 1, 0
        %v1325 = vsel %vm1261, 1, 0
        %v1326 = vsel %vm1262, 1, 0
        %v1327 = vsel %vm1263, 1, 0
        %v1328 = vsel %vm1264, 1, 0
        %v1329 = vsel %vm1265, 1, 0
        %v1330 = vsel %vm1266, 1, 0
        %v1331 = vsel %vm1267, 1, 0
        %v1332 = vsel %vm1268, 1, 0
        %v1333 = vsel %vm1269, 1, 0
        %v1334 = vsel %vm1270, 1, 0
        %v1335 = vsel %vm1271, 1, 0
        %v1336 = vsel %vm1272, 1, 0
        %v1337 = vsel %vm1273, 1, 0
        %v1338 = vsel %vm1274, 1, 0
        %v1339 = vsel %vm1275, 1, 0
        %v1340 = vsel %vm1276, 1, 0
        %v1341 = vsel %vm1277, 1, 0
        %v1342 = vsel %vm1278, 1, 0
        %v1343 = vsel %vm1279, 1, 0
        %v1344 = vsel %vm1280, 1, 0
        %v1345 = vsel %vm1281, 1, 0
        %v1346 = vsel %vm1282, 1, 0
        %v1347 = vsel %vm1283, 1, 0
        %v1348 = vsel %vm1284, 1, 0
        %v1349 = vsel %vm1285, 1, 0
        %v1350 = vsel %vm1286, 1, 0
        %v1351 = vsel %vm1287, 1, 0
        %v1352 = vsel %vm1288, 1, 0
        %v1353 = vsel %vm1289, 1, 0
        %v1354 = vsel %vm1290, 1, 0
        %v1355 = vsel %vm1291, 1, 0
        %v1356 = vsel %vm1292, 1, 0
        %v1357 = vsel %vm1293, 1, 0
        %v1358 = vsel %vm1294, 1, 0
        %v1359 = vsel %vm1295, 1, 0
        %v1360 = vsel %vm1296, 1, 0
        %v1361 = vsel %vm1297, 1, 0
        %v1362 = vsel %vm1298, 1, 0
        %v1363 = vsel %vm1299, 1, 0
        %v1364 = vsel %vm1300, 1, 0
        %v1365 = vsel %vm1301, 1, 0
        %v1366 = vsel %vm1302, 1, 0
        %v1367 = vsel %vm1303, 1, 0
        %v1368 = vsel %vm1304, 1, 0
        %v1369 = vsel %vm1305, 1, 0
        %v1370 = vsel %vm1306, 1, 0
        %v1371 = vsel %vm1307, 1, 0
        %v1372 = vsel %vm1308, 1, 0
        %v1373 = vsel %vm1309, 1, 0
        %v1374 = vsel %vm1310, 1, 0
        %v1375 = vsel %vm1311, 1, 0
        %v1376 = vsel %vm1312, 1, 0
        %v1377 = vsel %vm1313, 1, 0
        %v1378 = vsel %vm1314, 1, 0
        %v1379 = vsel %vm1315, 1, 0
        %v1380 = vcvt.s32.f32 %v1316
        %v1381 = vcvt.s32.f32 %v1317
        %v1382 = vcvt.s32.f32 %v1318
        %v1383 = vcvt.s32.f32 %v1319
        %v1384 = vcvt.s32.f32 %v1320
        %v1385 = vcvt.s32.f32 %v1321
        %v1386 = vcvt.s32.f32 %v1322
        %v1387 = vcvt.s32.f32 %v1323
        %v1388 = vcvt.s32.f32 %v1324
        %v1389 = vcvt.s32.f32 %v1325
        %v1390 = vcvt.s32.f32 %v1326
        %v1391 = vcvt.s32.f32 %v1327
        %v1392 = vcvt.s32.f32 %v1328
        %v1393 = vcvt.s32.f32 %v1329
        %v1394 = vcvt.s32.f32 %v1330
        %v1395 = vcvt.s32.f32 %v1331
        %v1396 = vcvt.s32.f32 %v1332
        %v1397 = vcvt.s32.f32 %v1333
        %v1398 = vcvt.s32.f32 %v1334
        %v1399 = vcvt.s32.f32 %v1335
        %v1400 = vcvt.s32.f32 %v1336
        %v1401 = vcvt.s32.f32 %v1337
        %v1402 = vcvt.s32.f32 %v1338
        %v1403 = vcvt.s32.f32 %v1339
        %v1404 = vcvt.s32.f32 %v1340
        %v1405 = vcvt.s32.f32 %v1341
        %v1406 = vcvt.s32.f32 %v1342
        %v1407 = vcvt.s32.f32 %v1343
        %v1408 = vcvt.s32.f32 %v1344
        %v1409 = vcvt.s32.f32 %v1345
        %v1410 = vcvt.s32.f32 %v1346
        %v1411 = vcvt.s32.f32 %v1347
        %v1412 = vcvt.s32.f32 %v1348
        %v1413 = vcvt.s32.f32 %v1349
        %v1414 = vcvt.s32.f32 %v1350
        %v1415 = vcvt.s32.f32 %v1351
        %v1416 = vcvt.s32.f32 %v1352
        %v1417 = vcvt.s32.f32 %v1353
        %v1418 = vcvt.s32.f32 %v1354
        %v1419 = vcvt.s32.f32 %v1355
        %v1420 = vcvt.s32.f32 %v1356
        %v1421 = vcvt.s32.f32 %v1357
        %v1422 = vcvt.s32.f32 %v1358
        %v1423 = vcvt.s32.f32 %v1359
        %v1424 = vcvt.s32.f32 %v1360
        %v1425 = vcvt.s32.f32 %v1361
        %v1426 = vcvt.s32.f32 %v1362
        %v1427 = vcvt.s32.f32 %v1363
        %v1428 = vcvt.s32.f32 %v1364
        %v1429 = vcvt.s32.f32 %v1365
        %v1430 = vcvt.s32.f32 %v1366
        %v1431 = vcvt.s32.f32 %v1367
        %v1432 = vcvt.s32.f32 %v1368
        %v1433 = vcvt.s32.f32 %v1369
        %v1434 = vcvt.s32.f32 %v1370
        %v1435 = vcvt.s32.f32 %v1371
        %v1436 = vcvt.s32.f32 %v1372
        %v1437 = vcvt.s32.f32 %v1373
        %v1438 = vcvt.s32.f32 %v1374
        %v1439 = vcvt.s32.f32 %v1375
        %v1440 = vcvt.s32.f32 %v1376
        %v1441 = vcvt.s32.f32 %v1377
        %v1442 = vcvt.s32.f32 %v1378
        %v1443 = vcvt.s32.f32 %v1379
        %v1444 = vpack.c.bf16 %v1382, %v1380
        %v1445 = vpack.c.bf16 %v1383, %v1381
        %v1446 = vpack.c.bf16 %v1386, %v1384
        %v1447 = vpack.c.bf16 %v1387, %v1385
        %v1448 = vpack.c.bf16 %v1390, %v1388
        %v1449 = vpack.c.bf16 %v1391, %v1389
        %v1450 = vpack.c.bf16 %v1394, %v1392
        %v1451 = vpack.c.bf16 %v1395, %v1393
        %v1452 = vpack.c.bf16 %v1398, %v1396
        %v1453 = vpack.c.bf16 %v1399, %v1397
        %v1454 = vpack.c.bf16 %v1402, %v1400
        %v1455 = vpack.c.bf16 %v1403, %v1401
        %v1456 = vpack.c.bf16 %v1406, %v1404
        %v1457 = vpack.c.bf16 %v1407, %v1405
        %v1458 = vpack.c.bf16 %v1410, %v1408
        %v1459 = vpack.c.bf16 %v1411, %v1409
        %v1460 = vpack.c.bf16 %v1414, %v1412
        %v1461 = vpack.c.bf16 %v1415, %v1413
        %v1462 = vpack.c.bf16 %v1418, %v1416
        %v1463 = vpack.c.bf16 %v1419, %v1417
        %v1464 = vpack.c.bf16 %v1422, %v1420
        %v1465 = vpack.c.bf16 %v1423, %v1421
        %v1466 = vpack.c.bf16 %v1426, %v1424
        %v1467 = vpack.c.bf16 %v1427, %v1425
        %v1468 = vpack.c.bf16 %v1430, %v1428
        %v1469 = vpack.c.bf16 %v1431, %v1429
        %v1470 = vpack.c.bf16 %v1434, %v1432
        %v1471 = vpack.c.bf16 %v1435, %v1433
        %v1472 = vpack.c.bf16 %v1438, %v1436
        %v1473 = vpack.c.bf16 %v1439, %v1437
        %v1474 = vpack.c.bf16 %v1442, %v1440
        %v1475 = vpack.c.bf16 %v1443, %v1441
        %v1476 = vld [vmem:[#allocation2] sm:$0xff]
        %v1477 = vld [vmem:[#allocation2 + $0x8] sm:$0xff]
        %v1478 = vld [vmem:[#allocation2 + $0x10] sm:$0xff]
        %v1479 = vld [vmem:[#allocation2 + $0x18] sm:$0xff]
        %v1480 = vld [vmem:[#allocation2 + $0x20] sm:$0xff]
        %v1481 = vld [vmem:[#allocation2 + $0x28] sm:$0xff]
        %v1482 = vld [vmem:[#allocation2 + $0x30] sm:$0xff]
        %v1483 = vld [vmem:[#allocation2 + $0x38] sm:$0xff]
        %v1484 = vld [vmem:[#allocation2 + $0x40] sm:$0xff]
        %v1485 = vld [vmem:[#allocation2 + $0x48] sm:$0xff]
        %v1486 = vld [vmem:[#allocation2 + $0x50] sm:$0xff]
        %v1487 = vld [vmem:[#allocation2 + $0x58] sm:$0xff]
        %v1488 = vld [vmem:[#allocation2 + $0x60] sm:$0xff]
        %v1489 = vld [vmem:[#allocation2 + $0x68] sm:$0xff]
        %v1490 = vld [vmem:[#allocation2 + $0x70] sm:$0xff]
        %v1491 = vld [vmem:[#allocation2 + $0x78] sm:$0xff]
        %v1492 = vld [vmem:[#allocation2 + $0x80] sm:$0xff]
        %v1493 = vld [vmem:[#allocation2 + $0x88] sm:$0xff]
        %v1494 = vld [vmem:[#allocation2 + $0x90] sm:$0xff]
        %v1495 = vld [vmem:[#allocation2 + $0x98] sm:$0xff]
        %v1496 = vld [vmem:[#allocation2 + $0xa0] sm:$0xff]
        %v1497 = vld [vmem:[#allocation2 + $0xa8] sm:$0xff]
        %v1498 = vld [vmem:[#allocation2 + $0xb0] sm:$0xff]
        %v1499 = vld [vmem:[#allocation2 + $0xb8] sm:$0xff]
        %v1500 = vld [vmem:[#allocation2 + $0xc0] sm:$0xff]
        %v1501 = vld [vmem:[#allocation2 + $0xc8] sm:$0xff]
        %v1502 = vld [vmem:[#allocation2 + $0xd0] sm:$0xff]
        %v1503 = vld [vmem:[#allocation2 + $0xd8] sm:$0xff]
        %v1504 = vld [vmem:[#allocation2 + $0xe0] sm:$0xff]
        %v1505 = vld [vmem:[#allocation2 + $0xe8] sm:$0xff]
        %v1506 = vld [vmem:[#allocation2 + $0xf0] sm:$0xff]
        %v1507 = vld [vmem:[#allocation2 + $0xf8] sm:$0xff]
        %v1540 = vunpack.c.l.b16 %v1476
        %v1541 = vunpack.c.h.b16 %v1476
        %v1542 = vunpack.c.l.b16 %v1477
        %v1543 = vunpack.c.h.b16 %v1477
        %v1544 = vunpack.c.l.b16 %v1478
        %v1545 = vunpack.c.h.b16 %v1478
        %v1546 = vunpack.c.l.b16 %v1479
        %v1547 = vunpack.c.h.b16 %v1479
        %v1548 = vunpack.c.l.b16 %v1480
        %v1549 = vunpack.c.h.b16 %v1480
        %v1550 = vunpack.c.l.b16 %v1481
        %v1551 = vunpack.c.h.b16 %v1481
        %v1552 = vunpack.c.l.b16 %v1482
        %v1553 = vunpack.c.h.b16 %v1482
        %v1554 = vunpack.c.l.b16 %v1483
        %v1555 = vunpack.c.h.b16 %v1483
        %v1556 = vunpack.c.l.b16 %v1484
        %v1557 = vunpack.c.h.b16 %v1484
        %v1558 = vunpack.c.l.b16 %v1485
        %v1559 = vunpack.c.h.b16 %v1485
        %v1560 = vunpack.c.l.b16 %v1486
        %v1561 = vunpack.c.h.b16 %v1486
        %v1562 = vunpack.c.l.b16 %v1487
        %v1563 = vunpack.c.h.b16 %v1487
        %v1564 = vunpack.c.l.b16 %v1488
        %v1565 = vunpack.c.h.b16 %v1488
        %v1566 = vunpack.c.l.b16 %v1489
        %v1567 = vunpack.c.h.b16 %v1489
        %v1568 = vunpack.c.l.b16 %v1490
        %v1569 = vunpack.c.h.b16 %v1490
        %v1570 = vunpack.c.l.b16 %v1491
        %v1571 = vunpack.c.h.b16 %v1491
        %v1572 = vunpack.c.l.b16 %v1492
        %v1573 = vunpack.c.h.b16 %v1492
        %v1574 = vunpack.c.l.b16 %v1493
        %v1575 = vunpack.c.h.b16 %v1493
        %v1576 = vunpack.c.l.b16 %v1494
        %v1577 = vunpack.c.h.b16 %v1494
        %v1578 = vunpack.c.l.b16 %v1495
        %v1579 = vunpack.c.h.b16 %v1495
        %v1580 = vunpack.c.l.b16 %v1496
        %v1581 = vunpack.c.h.b16 %v1496
        %v1582 = vunpack.c.l.b16 %v1497
        %v1583 = vunpack.c.h.b16 %v1497
        %v1584 = vunpack.c.l.b16 %v1498
        %v1585 = vunpack.c.h.b16 %v1498
        %v1586 = vunpack.c.l.b16 %v1499
        %v1587 = vunpack.c.h.b16 %v1499
        %v1588 = vunpack.c.l.b16 %v1500
        %v1589 = vunpack.c.h.b16 %v1500
        %v1590 = vunpack.c.l.b16 %v1501
        %v1591 = vunpack.c.h.b16 %v1501
        %v1592 = vunpack.c.l.b16 %v1502
        %v1593 = vunpack.c.h.b16 %v1502
        %v1594 = vunpack.c.l.b16 %v1503
        %v1595 = vunpack.c.h.b16 %v1503
        %v1596 = vunpack.c.l.b16 %v1504
        %v1597 = vunpack.c.h.b16 %v1504
        %v1598 = vunpack.c.l.b16 %v1505
        %v1599 = vunpack.c.h.b16 %v1505
        %v1600 = vunpack.c.l.b16 %v1506
        %v1601 = vunpack.c.h.b16 %v1506
        %v1602 = vunpack.c.l.b16 %v1507
        %v1603 = vunpack.c.h.b16 %v1507
        %v1604 = vpack.c.b16 %v1542, %v1540
        %v1605 = vpack.c.b16 %v1543, %v1541
        %v1606 = vpack.c.b16 %v1546, %v1544
        %v1607 = vpack.c.b16 %v1547, %v1545
        %v1608 = vpack.c.b16 %v1550, %v1548
        %v1609 = vpack.c.b16 %v1551, %v1549
        %v1610 = vpack.c.b16 %v1554, %v1552
        %v1611 = vpack.c.b16 %v1555, %v1553
        %v1612 = vpack.c.b16 %v1558, %v1556
        %v1613 = vpack.c.b16 %v1559, %v1557
        %v1614 = vpack.c.b16 %v1562, %v1560
        %v1615 = vpack.c.b16 %v1563, %v1561
        %v1616 = vpack.c.b16 %v1566, %v1564
        %v1617 = vpack.c.b16 %v1567, %v1565
        %v1618 = vpack.c.b16 %v1570, %v1568
        %v1619 = vpack.c.b16 %v1571, %v1569
        %v1620 = vpack.c.b16 %v1574, %v1572
        %v1621 = vpack.c.b16 %v1575, %v1573
        %v1622 = vpack.c.b16 %v1578, %v1576
        %v1623 = vpack.c.b16 %v1579, %v1577
        %v1624 = vpack.c.b16 %v1582, %v1580
        %v1625 = vpack.c.b16 %v1583, %v1581
        %v1626 = vpack.c.b16 %v1586, %v1584
        %v1627 = vpack.c.b16 %v1587, %v1585
        %v1628 = vpack.c.b16 %v1590, %v1588
        %v1629 = vpack.c.b16 %v1591, %v1589
        %v1630 = vpack.c.b16 %v1594, %v1592
        %v1631 = vpack.c.b16 %v1595, %v1593
        %v1632 = vpack.c.b16 %v1598, %v1596
        %v1633 = vpack.c.b16 %v1599, %v1597
        %v1634 = vpack.c.b16 %v1602, %v1600
        %v1635 = vpack.c.b16 %v1603, %v1601
        %1668 = vmatpush.bf16.msra.mxu0 %v1618
        %1669 = vmatpush.bf16.msra.mxu0 %v1616
        %1670 = vmatpush.bf16.msra.mxu0 %v1614
        %1671 = vmatpush.bf16.msra.mxu0 %v1612
        %1672 = vmatpush.bf16.msra.mxu0 %v1610
        %1673 = vmatpush.bf16.msra.mxu0 %v1608
        %1674 = vmatpush.bf16.msra.mxu0 %v1606
        %1675 = vmatpush.bf16.msra.mxu0 %v1604
        %1676 = vmatmul.bf16.gmra.mxu0 %v1444
        %v1677 = vpop.f32.mrf.mxu0
        %v1678 = vadd.f32 0.0, %v1677
        %v1679 = vpop.f32.mrf.mxu0
        %v1680 = vadd.f32 0.0, %v1679
        %1681 = vmatmul.bf16.gmra.mxu0 %v1446
        %v1682 = vpop.f32.mrf.mxu0
        %v1683 = vadd.f32 0.0, %v1682
        %v1684 = vpop.f32.mrf.mxu0
        %v1685 = vadd.f32 0.0, %v1684
        %1686 = vmatmul.bf16.gmra.mxu0 %v1448
        %v1687 = vpop.f32.mrf.mxu0
        %v1688 = vadd.f32 0.0, %v1687
        %v1689 = vpop.f32.mrf.mxu0
        %v1690 = vadd.f32 0.0, %v1689
        %1691 = vmatmul.bf16.gmra.mxu0 %v1450
        %v1692 = vpop.f32.mrf.mxu0
        %v1693 = vadd.f32 0.0, %v1692
        %v1694 = vpop.f32.mrf.mxu0
        %v1695 = vadd.f32 0.0, %v1694
        %1696 = vmatmul.bf16.gmra.mxu0 %v1452
        %v1697 = vpop.f32.mrf.mxu0
        %v1698 = vadd.f32 0.0, %v1697
        %v1699 = vpop.f32.mrf.mxu0
        %v1700 = vadd.f32 0.0, %v1699
        %1701 = vmatmul.bf16.gmra.mxu0 %v1454
        %v1702 = vpop.f32.mrf.mxu0
        %v1703 = vadd.f32 0.0, %v1702
        %v1704 = vpop.f32.mrf.mxu0
        %v1705 = vadd.f32 0.0, %v1704
        %1706 = vmatmul.bf16.gmra.mxu0 %v1456
        %v1707 = vpop.f32.mrf.mxu0
        %v1708 = vadd.f32 0.0, %v1707
        %v1709 = vpop.f32.mrf.mxu0
        %v1710 = vadd.f32 0.0, %v1709
        %1711 = vmatmul.bf16.gmra.mxu0 %v1458
        %v1712 = vpop.f32.mrf.mxu0
        %v1713 = vadd.f32 0.0, %v1712
        %v1714 = vpop.f32.mrf.mxu0
        %v1715 = vadd.f32 0.0, %v1714
        %1716 = vmatmul.bf16.gmra.mxu0 %v1460
        %v1717 = vpop.f32.mrf.mxu0
        %v1718 = vadd.f32 0.0, %v1717
        %v1719 = vpop.f32.mrf.mxu0
        %v1720 = vadd.f32 0.0, %v1719
        %1721 = vmatmul.bf16.gmra.mxu0 %v1462
        %v1722 = vpop.f32.mrf.mxu0
        %v1723 = vadd.f32 0.0, %v1722
        %v1724 = vpop.f32.mrf.mxu0
        %v1725 = vadd.f32 0.0, %v1724
        %1726 = vmatmul.bf16.gmra.mxu0 %v1464
        %v1727 = vpop.f32.mrf.mxu0
        %v1728 = vadd.f32 0.0, %v1727
        %v1729 = vpop.f32.mrf.mxu0
        %v1730 = vadd.f32 0.0, %v1729
        %1731 = vmatmul.bf16.gmra.mxu0 %v1466
        %v1732 = vpop.f32.mrf.mxu0
        %v1733 = vadd.f32 0.0, %v1732
        %v1734 = vpop.f32.mrf.mxu0
        %v1735 = vadd.f32 0.0, %v1734
        %1736 = vmatmul.bf16.gmra.mxu0 %v1468
        %v1737 = vpop.f32.mrf.mxu0
        %v1738 = vadd.f32 0.0, %v1737
        %v1739 = vpop.f32.mrf.mxu0
        %v1740 = vadd.f32 0.0, %v1739
        %1741 = vmatmul.bf16.gmra.mxu0 %v1470
        %v1742 = vpop.f32.mrf.mxu0
        %v1743 = vadd.f32 0.0, %v1742
        %v1744 = vpop.f32.mrf.mxu0
        %v1745 = vadd.f32 0.0, %v1744
        %1746 = vmatmul.bf16.gmra.mxu0 %v1472
        %v1747 = vpop.f32.mrf.mxu0
        %v1748 = vadd.f32 0.0, %v1747
        %v1749 = vpop.f32.mrf.mxu0
        %v1750 = vadd.f32 0.0, %v1749
        %1751 = vmatmul.bf16.gmra.mxu0 %v1474
        %v1752 = vpop.f32.mrf.mxu0
        %v1753 = vadd.f32 0.0, %v1752
        %v1754 = vpop.f32.mrf.mxu0
        %v1755 = vadd.f32 0.0, %v1754
        %1756 = vdwg.mxu0
        %1757 = vmatpush.bf16.msra.mxu0 %v1634
        %1758 = vmatpush.bf16.msra.mxu0 %v1632
        %1759 = vmatpush.bf16.msra.mxu0 %v1630
        %1760 = vmatpush.bf16.msra.mxu0 %v1628
        %1761 = vmatpush.bf16.msra.mxu0 %v1626
        %1762 = vmatpush.bf16.msra.mxu0 %v1624
        %1763 = vmatpush.bf16.msra.mxu0 %v1622
        %1764 = vmatpush.bf16.msra.mxu0 %v1620
        %1765 = vmatmul.bf16.gmra.mxu0 %v1445
        %v1766 = vpop.f32.mrf.mxu0
        %v1767 = vadd.f32 %v1678, %v1766
        %v1768 = vpop.f32.mrf.mxu0
        %v1769 = vadd.f32 %v1680, %v1768
        %1770 = vmatmul.bf16.gmra.mxu0 %v1447
        %v1771 = vpop.f32.mrf.mxu0
        %v1772 = vadd.f32 %v1683, %v1771
        %v1773 = vpop.f32.mrf.mxu0
        %v1774 = vadd.f32 %v1685, %v1773
        %1775 = vmatmul.bf16.gmra.mxu0 %v1449
        %v1776 = vpop.f32.mrf.mxu0
        %v1777 = vadd.f32 %v1688, %v1776
        %v1778 = vpop.f32.mrf.mxu0
        %v1779 = vadd.f32 %v1690, %v1778
        %1780 = vmatmul.bf16.gmra.mxu0 %v1451
        %v1781 = vpop.f32.mrf.mxu0
        %v1782 = vadd.f32 %v1693, %v1781
        %v1783 = vpop.f32.mrf.mxu0
        %v1784 = vadd.f32 %v1695, %v1783
        %1785 = vmatmul.bf16.gmra.mxu0 %v1453
        %v1786 = vpop.f32.mrf.mxu0
        %v1787 = vadd.f32 %v1698, %v1786
        %v1788 = vpop.f32.mrf.mxu0
        %v1789 = vadd.f32 %v1700, %v1788
        %1790 = vmatmul.bf16.gmra.mxu0 %v1455
        %v1791 = vpop.f32.mrf.mxu0
        %v1792 = vadd.f32 %v1703, %v1791
        %v1793 = vpop.f32.mrf.mxu0
        %v1794 = vadd.f32 %v1705, %v1793
        %1795 = vmatmul.bf16.gmra.mxu0 %v1457
        %v1796 = vpop.f32.mrf.mxu0
        %v1797 = vadd.f32 %v1708, %v1796
        %v1798 = vpop.f32.mrf.mxu0
        %v1799 = vadd.f32 %v1710, %v1798
        %1800 = vmatmul.bf16.gmra.mxu0 %v1459
        %v1801 = vpop.f32.mrf.mxu0
        %v1802 = vadd.f32 %v1713, %v1801
        %v1803 = vpop.f32.mrf.mxu0
        %v1804 = vadd.f32 %v1715, %v1803
        %1805 = vmatmul.bf16.gmra.mxu0 %v1461
        %v1806 = vpop.f32.mrf.mxu0
        %v1807 = vadd.f32 %v1718, %v1806
        %v1808 = vpop.f32.mrf.mxu0
        %v1809 = vadd.f32 %v1720, %v1808
        %1810 = vmatmul.bf16.gmra.mxu0 %v1463
        %v1811 = vpop.f32.mrf.mxu0
        %v1812 = vadd.f32 %v1723, %v1811
        %v1813 = vpop.f32.mrf.mxu0
        %v1814 = vadd.f32 %v1725, %v1813
        %1815 = vmatmul.bf16.gmra.mxu0 %v1465
        %v1816 = vpop.f32.mrf.mxu0
        %v1817 = vadd.f32 %v1728, %v1816
        %v1818 = vpop.f32.mrf.mxu0
        %v1819 = vadd.f32 %v1730, %v1818
        %1820 = vmatmul.bf16.gmra.mxu0 %v1467
        %v1821 = vpop.f32.mrf.mxu0
        %v1822 = vadd.f32 %v1733, %v1821
        %v1823 = vpop.f32.mrf.mxu0
        %v1824 = vadd.f32 %v1735, %v1823
        %1825 = vmatmul.bf16.gmra.mxu0 %v1469
        %v1826 = vpop.f32.mrf.mxu0
        %v1827 = vadd.f32 %v1738, %v1826
        %v1828 = vpop.f32.mrf.mxu0
        %v1829 = vadd.f32 %v1740, %v1828
        %1830 = vmatmul.bf16.gmra.mxu0 %v1471
        %v1831 = vpop.f32.mrf.mxu0
        %v1832 = vadd.f32 %v1743, %v1831
        %v1833 = vpop.f32.mrf.mxu0
        %v1834 = vadd.f32 %v1745, %v1833
        %1835 = vmatmul.bf16.gmra.mxu0 %v1473
        %v1836 = vpop.f32.mrf.mxu0
        %v1837 = vadd.f32 %v1748, %v1836
        %v1838 = vpop.f32.mrf.mxu0
        %v1839 = vadd.f32 %v1750, %v1838
        %1840 = vmatmul.bf16.gmra.mxu0 %v1475
        %v1841 = vpop.f32.mrf.mxu0
        %v1842 = vadd.f32 %v1753, %v1841
        %v1843 = vpop.f32.mrf.mxu0
        %v1844 = vadd.f32 %v1755, %v1843
        %1845 = vdwg.mxu0
        %1846 = vmatpush.bf16.msra.mxu0 %v1619
        %1847 = vmatpush.bf16.msra.mxu0 %v1617
        %1848 = vmatpush.bf16.msra.mxu0 %v1615
        %1849 = vmatpush.bf16.msra.mxu0 %v1613
        %1850 = vmatpush.bf16.msra.mxu0 %v1611
        %1851 = vmatpush.bf16.msra.mxu0 %v1609
        %1852 = vmatpush.bf16.msra.mxu0 %v1607
        %1853 = vmatpush.bf16.msra.mxu0 %v1605
        %1854 = vmatmul.bf16.gmra.mxu0 %v1444
        %v1855 = vpop.f32.mrf.mxu0
        %v1856 = vadd.f32 0.0, %v1855
        %v1857 = vpop.f32.mrf.mxu0
        %v1858 = vadd.f32 0.0, %v1857
        %1859 = vmatmul.bf16.gmra.mxu0 %v1446
        %v1860 = vpop.f32.mrf.mxu0
        %v1861 = vadd.f32 0.0, %v1860
        %v1862 = vpop.f32.mrf.mxu0
        %v1863 = vadd.f32 0.0, %v1862
        %1864 = vmatmul.bf16.gmra.mxu0 %v1448
        %v1865 = vpop.f32.mrf.mxu0
        %v1866 = vadd.f32 0.0, %v1865
        %v1867 = vpop.f32.mrf.mxu0
        %v1868 = vadd.f32 0.0, %v1867
        %1869 = vmatmul.bf16.gmra.mxu0 %v1450
        %v1870 = vpop.f32.mrf.mxu0
        %v1871 = vadd.f32 0.0, %v1870
        %v1872 = vpop.f32.mrf.mxu0
        %v1873 = vadd.f32 0.0, %v1872
        %1874 = vmatmul.bf16.gmra.mxu0 %v1452
        %v1875 = vpop.f32.mrf.mxu0
        %v1876 = vadd.f32 0.0, %v1875
        %v1877 = vpop.f32.mrf.mxu0
        %v1878 = vadd.f32 0.0, %v1877
        %1879 = vmatmul.bf16.gmra.mxu0 %v1454
        %v1880 = vpop.f32.mrf.mxu0
        %v1881 = vadd.f32 0.0, %v1880
        %v1882 = vpop.f32.mrf.mxu0
        %v1883 = vadd.f32 0.0, %v1882
        %1884 = vmatmul.bf16.gmra.mxu0 %v1456
        %v1885 = vpop.f32.mrf.mxu0
        %v1886 = vadd.f32 0.0, %v1885
        %v1887 = vpop.f32.mrf.mxu0
        %v1888 = vadd.f32 0.0, %v1887
        %1889 = vmatmul.bf16.gmra.mxu0 %v1458
        %v1890 = vpop.f32.mrf.mxu0
        %v1891 = vadd.f32 0.0, %v1890
        %v1892 = vpop.f32.mrf.mxu0
        %v1893 = vadd.f32 0.0, %v1892
        %1894 = vmatmul.bf16.gmra.mxu0 %v1460
        %v1895 = vpop.f32.mrf.mxu0
        %v1896 = vadd.f32 0.0, %v1895
        %v1897 = vpop.f32.mrf.mxu0
        %v1898 = vadd.f32 0.0, %v1897
        %1899 = vmatmul.bf16.gmra.mxu0 %v1462
        %v1900 = vpop.f32.mrf.mxu0
        %v1901 = vadd.f32 0.0, %v1900
        %v1902 = vpop.f32.mrf.mxu0
        %v1903 = vadd.f32 0.0, %v1902
        %1904 = vmatmul.bf16.gmra.mxu0 %v1464
        %v1905 = vpop.f32.mrf.mxu0
        %v1906 = vadd.f32 0.0, %v1905
        %v1907 = vpop.f32.mrf.mxu0
        %v1908 = vadd.f32 0.0, %v1907
        %1909 = vmatmul.bf16.gmra.mxu0 %v1466
        %v1910 = vpop.f32.mrf.mxu0
        %v1911 = vadd.f32 0.0, %v1910
        %v1912 = vpop.f32.mrf.mxu0
        %v1913 = vadd.f32 0.0, %v1912
        %1914 = vmatmul.bf16.gmra.mxu0 %v1468
        %v1915 = vpop.f32.mrf.mxu0
        %v1916 = vadd.f32 0.0, %v1915
        %v1917 = vpop.f32.mrf.mxu0
        %v1918 = vadd.f32 0.0, %v1917
        %1919 = vmatmul.bf16.gmra.mxu0 %v1470
        %v1920 = vpop.f32.mrf.mxu0
        %v1921 = vadd.f32 0.0, %v1920
        %v1922 = vpop.f32.mrf.mxu0
        %v1923 = vadd.f32 0.0, %v1922
        %1924 = vmatmul.bf16.gmra.mxu0 %v1472
        %v1925 = vpop.f32.mrf.mxu0
        %v1926 = vadd.f32 0.0, %v1925
        %v1927 = vpop.f32.mrf.mxu0
        %v1928 = vadd.f32 0.0, %v1927
        %1929 = vmatmul.bf16.gmra.mxu0 %v1474
        %v1930 = vpop.f32.mrf.mxu0
        %v1931 = vadd.f32 0.0, %v1930
        %v1932 = vpop.f32.mrf.mxu0
        %v1933 = vadd.f32 0.0, %v1932
        %1934 = vdwg.mxu0
        %1935 = vmatpush.bf16.msra.mxu0 %v1635
        %1936 = vmatpush.bf16.msra.mxu0 %v1633
        %1937 = vmatpush.bf16.msra.mxu0 %v1631
        %1938 = vmatpush.bf16.msra.mxu0 %v1629
        %1939 = vmatpush.bf16.msra.mxu0 %v1627
        %1940 = vmatpush.bf16.msra.mxu0 %v1625
        %1941 = vmatpush.bf16.msra.mxu0 %v1623
        %1942 = vmatpush.bf16.msra.mxu0 %v1621
        %1943 = vmatmul.bf16.gmra.mxu0 %v1445
        %v1944 = vpop.f32.mrf.mxu0
        %v1945 = vadd.f32 %v1856, %v1944
        %v1946 = vpop.f32.mrf.mxu0
        %v1947 = vadd.f32 %v1858, %v1946
        %1948 = vmatmul.bf16.gmra.mxu0 %v1447
        %v1949 = vpop.f32.mrf.mxu0
        %v1950 = vadd.f32 %v1861, %v1949
        %v1951 = vpop.f32.mrf.mxu0
        %v1952 = vadd.f32 %v1863, %v1951
        %1953 = vmatmul.bf16.gmra.mxu0 %v1449
        %v1954 = vpop.f32.mrf.mxu0
        %v1955 = vadd.f32 %v1866, %v1954
        %v1956 = vpop.f32.mrf.mxu0
        %v1957 = vadd.f32 %v1868, %v1956
        %1958 = vmatmul.bf16.gmra.mxu0 %v1451
        %v1959 = vpop.f32.mrf.mxu0
        %v1960 = vadd.f32 %v1871, %v1959
        %v1961 = vpop.f32.mrf.mxu0
        %v1962 = vadd.f32 %v1873, %v1961
        %1963 = vmatmul.bf16.gmra.mxu0 %v1453
        %v1964 = vpop.f32.mrf.mxu0
        %v1965 = vadd.f32 %v1876, %v1964
        %v1966 = vpop.f32.mrf.mxu0
        %v1967 = vadd.f32 %v1878, %v1966
        %1968 = vmatmul.bf16.gmra.mxu0 %v1455
        %v1969 = vpop.f32.mrf.mxu0
        %v1970 = vadd.f32 %v1881, %v1969
        %v1971 = vpop.f32.mrf.mxu0
        %v1972 = vadd.f32 %v1883, %v1971
        %1973 = vmatmul.bf16.gmra.mxu0 %v1457
        %v1974 = vpop.f32.mrf.mxu0
        %v1975 = vadd.f32 %v1886, %v1974
        %v1976 = vpop.f32.mrf.mxu0
        %v1977 = vadd.f32 %v1888, %v1976
        %1978 = vmatmul.bf16.gmra.mxu0 %v1459
        %v1979 = vpop.f32.mrf.mxu0
        %v1980 = vadd.f32 %v1891, %v1979
        %v1981 = vpop.f32.mrf.mxu0
        %v1982 = vadd.f32 %v1893, %v1981
        %1983 = vmatmul.bf16.gmra.mxu0 %v1461
        %v1984 = vpop.f32.mrf.mxu0
        %v1985 = vadd.f32 %v1896, %v1984
        %v1986 = vpop.f32.mrf.mxu0
        %v1987 = vadd.f32 %v1898, %v1986
        %1988 = vmatmul.bf16.gmra.mxu0 %v1463
        %v1989 = vpop.f32.mrf.mxu0
        %v1990 = vadd.f32 %v1901, %v1989
        %v1991 = vpop.f32.mrf.mxu0
        %v1992 = vadd.f32 %v1903, %v1991
        %1993 = vmatmul.bf16.gmra.mxu0 %v1465
        %v1994 = vpop.f32.mrf.mxu0
        %v1995 = vadd.f32 %v1906, %v1994
        %v1996 = vpop.f32.mrf.mxu0
        %v1997 = vadd.f32 %v1908, %v1996
        %1998 = vmatmul.bf16.gmra.mxu0 %v1467
        %v1999 = vpop.f32.mrf.mxu0
        %v2000 = vadd.f32 %v1911, %v1999
        %v2001 = vpop.f32.mrf.mxu0
        %v2002 = vadd.f32 %v1913, %v2001
        %2003 = vmatmul.bf16.gmra.mxu0 %v1469
        %v2004 = vpop.f32.mrf.mxu0
        %v2005 = vadd.f32 %v1916, %v2004
        %v2006 = vpop.f32.mrf.mxu0
        %v2007 = vadd.f32 %v1918, %v2006
        %2008 = vmatmul.bf16.gmra.mxu0 %v1471
        %v2009 = vpop.f32.mrf.mxu0
        %v2010 = vadd.f32 %v1921, %v2009
        %v2011 = vpop.f32.mrf.mxu0
        %v2012 = vadd.f32 %v1923, %v2011
        %2013 = vmatmul.bf16.gmra.mxu0 %v1473
        %v2014 = vpop.f32.mrf.mxu0
        %v2015 = vadd.f32 %v1926, %v2014
        %v2016 = vpop.f32.mrf.mxu0
        %v2017 = vadd.f32 %v1928, %v2016
        %2018 = vmatmul.bf16.gmra.mxu0 %v1475
        %v2019 = vpop.f32.mrf.mxu0
        %v2020 = vadd.f32 %v1931, %v2019
        %v2021 = vpop.f32.mrf.mxu0
        %v2022 = vadd.f32 %v1933, %v2021
        %2023 = vdwg.mxu0
        %v2024 = vmax.f32 %v1767, 0.0
        %v2025 = vmax.f32 %v1769, 0.0
        %v2026 = vmax.f32 %v1772, 0.0
        %v2027 = vmax.f32 %v1774, 0.0
        %v2028 = vmax.f32 %v1777, 0.0
        %v2029 = vmax.f32 %v1779, 0.0
        %v2030 = vmax.f32 %v1782, 0.0
        %v2031 = vmax.f32 %v1784, 0.0
        %v2032 = vmax.f32 %v1787, 0.0
        %v2033 = vmax.f32 %v1789, 0.0
        %v2034 = vmax.f32 %v1792, 0.0
        %v2035 = vmax.f32 %v1794, 0.0
        %v2036 = vmax.f32 %v1797, 0.0
        %v2037 = vmax.f32 %v1799, 0.0
        %v2038 = vmax.f32 %v1802, 0.0
        %v2039 = vmax.f32 %v1804, 0.0
        %v2040 = vmax.f32 %v1807, 0.0
        %v2041 = vmax.f32 %v1809, 0.0
        %v2042 = vmax.f32 %v1812, 0.0
        %v2043 = vmax.f32 %v1814, 0.0
        %v2044 = vmax.f32 %v1817, 0.0
        %v2045 = vmax.f32 %v1819, 0.0
        %v2046 = vmax.f32 %v1822, 0.0
        %v2047 = vmax.f32 %v1824, 0.0
        %v2048 = vmax.f32 %v1827, 0.0
        %v2049 = vmax.f32 %v1829, 0.0
        %v2050 = vmax.f32 %v1832, 0.0
        %v2051 = vmax.f32 %v1834, 0.0
        %v2052 = vmax.f32 %v1837, 0.0
        %v2053 = vmax.f32 %v1839, 0.0
        %v2054 = vmax.f32 %v1842, 0.0
        %v2055 = vmax.f32 %v1844, 0.0
        %v2056 = vpack.c.bf16 %v2025, %v2024
        %v2057 = vpack.c.bf16 %v2027, %v2026
        %v2058 = vpack.c.bf16 %v2029, %v2028
        %v2059 = vpack.c.bf16 %v2031, %v2030
        %v2060 = vpack.c.bf16 %v2033, %v2032
        %v2061 = vpack.c.bf16 %v2035, %v2034
        %v2062 = vpack.c.bf16 %v2037, %v2036
        %v2063 = vpack.c.bf16 %v2039, %v2038
        %v2064 = vpack.c.bf16 %v2041, %v2040
        %v2065 = vpack.c.bf16 %v2043, %v2042
        %v2066 = vpack.c.bf16 %v2045, %v2044
        %v2067 = vpack.c.bf16 %v2047, %v2046
        %v2068 = vpack.c.bf16 %v2049, %v2048
        %v2069 = vpack.c.bf16 %v2051, %v2050
        %v2070 = vpack.c.bf16 %v2053, %v2052
        %v2071 = vpack.c.bf16 %v2055, %v2054
        %v2072 = vld [vmem:[%s5] sm:$0xf]
        %v2073 = vld [vmem:[%s5 + $0x4] sm:$0xf]
        %v2074 = vld [vmem:[%s5 + $0x8] sm:$0xf]
        %v2075 = vld [vmem:[%s5 + $0xc] sm:$0xf]
        %v2076 = vld [vmem:[%s5 + $0x10] sm:$0xf]
        %v2077 = vld [vmem:[%s5 + $0x14] sm:$0xf]
        %v2078 = vld [vmem:[%s5 + $0x18] sm:$0xf]
        %v2079 = vld [vmem:[%s5 + $0x1c] sm:$0xf]
        %v2080 = vld [vmem:[%s5 + $0x20] sm:$0xf]
        %v2081 = vld [vmem:[%s5 + $0x24] sm:$0xf]
        %v2082 = vld [vmem:[%s5 + $0x28] sm:$0xf]
        %v2083 = vld [vmem:[%s5 + $0x2c] sm:$0xf]
        %v2084 = vld [vmem:[%s5 + $0x30] sm:$0xf]
        %v2085 = vld [vmem:[%s5 + $0x34] sm:$0xf]
        %v2086 = vld [vmem:[%s5 + $0x38] sm:$0xf]
        %v2087 = vld [vmem:[%s5 + $0x3c] sm:$0xf]
        %v2104 = vunpack.c.l.b16 %v2072
        %v2105 = vunpack.c.l.b16 %v2073
        %v2106 = vunpack.c.l.b16 %v2074
        %v2107 = vunpack.c.l.b16 %v2075
        %v2108 = vunpack.c.l.b16 %v2076
        %v2109 = vunpack.c.l.b16 %v2077
        %v2110 = vunpack.c.l.b16 %v2078
        %v2111 = vunpack.c.l.b16 %v2079
        %v2112 = vunpack.c.l.b16 %v2080
        %v2113 = vunpack.c.l.b16 %v2081
        %v2114 = vunpack.c.l.b16 %v2082
        %v2115 = vunpack.c.l.b16 %v2083
        %v2116 = vunpack.c.l.b16 %v2084
        %v2117 = vunpack.c.l.b16 %v2085
        %v2118 = vunpack.c.l.b16 %v2086
        %v2119 = vunpack.c.l.b16 %v2087
        %v2120 = vpack.c.b16 %v2105, %v2104
        %v2121 = vpack.c.b16 %v2107, %v2106
        %v2122 = vpack.c.b16 %v2109, %v2108
        %v2123 = vpack.c.b16 %v2111, %v2110
        %v2124 = vpack.c.b16 %v2113, %v2112
        %v2125 = vpack.c.b16 %v2115, %v2114
        %v2126 = vpack.c.b16 %v2117, %v2116
        %v2127 = vpack.c.b16 %v2119, %v2118
        %2136 = vmatpush.bf16.msra.mxu0 %v2127
        %2137 = vmatpush.bf16.msra.mxu0 %v2126
        %2138 = vmatpush.bf16.msra.mxu0 %v2125
        %2139 = vmatpush.bf16.msra.mxu0 %v2124
        %2140 = vmatpush.bf16.msra.mxu0 %v2123
        %2141 = vmatpush.bf16.msra.mxu0 %v2122
        %2142 = vmatpush.bf16.msra.mxu0 %v2121
        %2143 = vmatpush.bf16.msra.mxu0 %v2120
        %2144 = vmatmul.bf16.gmra.mxu0 %v2056
        %v2145 = vpop.f32.mrf.mxu0
        %v2146 = vadd.f32 %v1945, %v2145
        %v2147 = vpop.f32.mrf.mxu0
        %v2148 = vadd.f32 %v1947, %v2147
        %2149 = vmatmul.bf16.gmra.mxu0 %v2057
        %v2150 = vpop.f32.mrf.mxu0
        %v2151 = vadd.f32 %v1950, %v2150
        %v2152 = vpop.f32.mrf.mxu0
        %v2153 = vadd.f32 %v1952, %v2152
        %2154 = vmatmul.bf16.gmra.mxu0 %v2058
        %v2155 = vpop.f32.mrf.mxu0
        %v2156 = vadd.f32 %v1955, %v2155
        %v2157 = vpop.f32.mrf.mxu0
        %v2158 = vadd.f32 %v1957, %v2157
        %2159 = vmatmul.bf16.gmra.mxu0 %v2059
        %v2160 = vpop.f32.mrf.mxu0
        %v2161 = vadd.f32 %v1960, %v2160
        %v2162 = vpop.f32.mrf.mxu0
        %v2163 = vadd.f32 %v1962, %v2162
        %2164 = vmatmul.bf16.gmra.mxu0 %v2060
        %v2165 = vpop.f32.mrf.mxu0
        %v2166 = vadd.f32 %v1965, %v2165
        %v2167 = vpop.f32.mrf.mxu0
        %v2168 = vadd.f32 %v1967, %v2167
        %2169 = vmatmul.bf16.gmra.mxu0 %v2061
        %v2170 = vpop.f32.mrf.mxu0
        %v2171 = vadd.f32 %v1970, %v2170
        %v2172 = vpop.f32.mrf.mxu0
        %v2173 = vadd.f32 %v1972, %v2172
        %2174 = vmatmul.bf16.gmra.mxu0 %v2062
        %v2175 = vpop.f32.mrf.mxu0
        %v2176 = vadd.f32 %v1975, %v2175
        %v2177 = vpop.f32.mrf.mxu0
        %v2178 = vadd.f32 %v1977, %v2177
        %2179 = vmatmul.bf16.gmra.mxu0 %v2063
        %v2180 = vpop.f32.mrf.mxu0
        %v2181 = vadd.f32 %v1980, %v2180
        %v2182 = vpop.f32.mrf.mxu0
        %v2183 = vadd.f32 %v1982, %v2182
        %2184 = vmatmul.bf16.gmra.mxu0 %v2064
        %v2185 = vpop.f32.mrf.mxu0
        %v2186 = vadd.f32 %v1985, %v2185
        %v2187 = vpop.f32.mrf.mxu0
        %v2188 = vadd.f32 %v1987, %v2187
        %2189 = vmatmul.bf16.gmra.mxu0 %v2065
        %v2190 = vpop.f32.mrf.mxu0
        %v2191 = vadd.f32 %v1990, %v2190
        %v2192 = vpop.f32.mrf.mxu0
        %v2193 = vadd.f32 %v1992, %v2192
        %2194 = vmatmul.bf16.gmra.mxu0 %v2066
        %v2195 = vpop.f32.mrf.mxu0
        %v2196 = vadd.f32 %v1995, %v2195
        %v2197 = vpop.f32.mrf.mxu0
        %v2198 = vadd.f32 %v1997, %v2197
        %2199 = vmatmul.bf16.gmra.mxu0 %v2067
        %v2200 = vpop.f32.mrf.mxu0
        %v2201 = vadd.f32 %v2000, %v2200
        %v2202 = vpop.f32.mrf.mxu0
        %v2203 = vadd.f32 %v2002, %v2202
        %2204 = vmatmul.bf16.gmra.mxu0 %v2068
        %v2205 = vpop.f32.mrf.mxu0
        %v2206 = vadd.f32 %v2005, %v2205
        %v2207 = vpop.f32.mrf.mxu0
        %v2208 = vadd.f32 %v2007, %v2207
        %2209 = vmatmul.bf16.gmra.mxu0 %v2069
        %v2210 = vpop.f32.mrf.mxu0
        %v2211 = vadd.f32 %v2010, %v2210
        %v2212 = vpop.f32.mrf.mxu0
        %v2213 = vadd.f32 %v2012, %v2212
        %2214 = vmatmul.bf16.gmra.mxu0 %v2070
        %v2215 = vpop.f32.mrf.mxu0
        %v2216 = vadd.f32 %v2015, %v2215
        %v2217 = vpop.f32.mrf.mxu0
        %v2218 = vadd.f32 %v2017, %v2217
        %2219 = vmatmul.bf16.gmra.mxu0 %v2071
        %v2220 = vpop.f32.mrf.mxu0
        %v2221 = vadd.f32 %v2020, %v2220
        %v2222 = vpop.f32.mrf.mxu0
        %v2223 = vadd.f32 %v2022, %v2222
        %2224 = vdwg.mxu0
        %v2225 = vpack.c.bf16 %v2146, %v2146
        %v2226 = vpack.c.bf16 %v2148, %v2148
        %v2227 = vpack.c.bf16 %v2151, %v2151
        %v2228 = vpack.c.bf16 %v2153, %v2153
        %v2229 = vpack.c.bf16 %v2156, %v2156
        %v2230 = vpack.c.bf16 %v2158, %v2158
        %v2231 = vpack.c.bf16 %v2161, %v2161
        %v2232 = vpack.c.bf16 %v2163, %v2163
        %v2233 = vpack.c.bf16 %v2166, %v2166
        %v2234 = vpack.c.bf16 %v2168, %v2168
        %v2235 = vpack.c.bf16 %v2171, %v2171
        %v2236 = vpack.c.bf16 %v2173, %v2173
        %v2237 = vpack.c.bf16 %v2176, %v2176
        %v2238 = vpack.c.bf16 %v2178, %v2178
        %v2239 = vpack.c.bf16 %v2181, %v2181
        %v2240 = vpack.c.bf16 %v2183, %v2183
        %v2241 = vpack.c.bf16 %v2186, %v2186
        %v2242 = vpack.c.bf16 %v2188, %v2188
        %v2243 = vpack.c.bf16 %v2191, %v2191
        %v2244 = vpack.c.bf16 %v2193, %v2193
        %v2245 = vpack.c.bf16 %v2196, %v2196
        %v2246 = vpack.c.bf16 %v2198, %v2198
        %v2247 = vpack.c.bf16 %v2201, %v2201
        %v2248 = vpack.c.bf16 %v2203, %v2203
        %v2249 = vpack.c.bf16 %v2206, %v2206
        %v2250 = vpack.c.bf16 %v2208, %v2208
        %v2251 = vpack.c.bf16 %v2211, %v2211
        %v2252 = vpack.c.bf16 %v2213, %v2213
        %v2253 = vpack.c.bf16 %v2216, %v2216
        %v2254 = vpack.c.bf16 %v2218, %v2218
        %v2255 = vpack.c.bf16 %v2221, %v2221
        %v2256 = vpack.c.bf16 %v2223, %v2223
        %2257 = vst [vmem:[%s322] sm:$0xf] %v2225
        %2258 = vst [vmem:[%s322 + $0x4] sm:$0xf] %v2226
        %2259 = vst [vmem:[%s322 + $0x8] sm:$0xf] %v2227
        %2260 = vst [vmem:[%s322 + $0xc] sm:$0xf] %v2228
        %2261 = vst [vmem:[%s322 + $0x10] sm:$0xf] %v2229
        %2262 = vst [vmem:[%s322 + $0x14] sm:$0xf] %v2230
        %2263 = vst [vmem:[%s322 + $0x18] sm:$0xf] %v2231
        %2264 = vst [vmem:[%s322 + $0x1c] sm:$0xf] %v2232
        %2265 = vst [vmem:[%s322 + $0x20] sm:$0xf] %v2233
        %2266 = vst [vmem:[%s322 + $0x24] sm:$0xf] %v2234
        %2267 = vst [vmem:[%s322 + $0x28] sm:$0xf] %v2235
        %2268 = vst [vmem:[%s322 + $0x2c] sm:$0xf] %v2236
        %2269 = vst [vmem:[%s322 + $0x30] sm:$0xf] %v2237
        %2270 = vst [vmem:[%s322 + $0x34] sm:$0xf] %v2238
        %2271 = vst [vmem:[%s322 + $0x38] sm:$0xf] %v2239
        %2272 = vst [vmem:[%s322 + $0x3c] sm:$0xf] %v2240
        %2273 = vst [vmem:[%s322 + $0x40] sm:$0xf] %v2241
        %2274 = vst [vmem:[%s322 + $0x44] sm:$0xf] %v2242
        %2275 = vst [vmem:[%s322 + $0x48] sm:$0xf] %v2243
        %2276 = vst [vmem:[%s322 + $0x4c] sm:$0xf] %v2244
        %2277 = vst [vmem:[%s322 + $0x50] sm:$0xf] %v2245
        %2278 = vst [vmem:[%s322 + $0x54] sm:$0xf] %v2246
        %2279 = vst [vmem:[%s322 + $0x58] sm:$0xf] %v2247
        %2280 = vst [vmem:[%s322 + $0x5c] sm:$0xf] %v2248
        %2281 = vst [vmem:[%s322 + $0x60] sm:$0xf] %v2249
        %2282 = vst [vmem:[%s322 + $0x64] sm:$0xf] %v2250
        %2283 = vst [vmem:[%s322 + $0x68] sm:$0xf] %v2251
        %2284 = vst [vmem:[%s322 + $0x6c] sm:$0xf] %v2252
        %2285 = vst [vmem:[%s322 + $0x70] sm:$0xf] %v2253
        %2286 = vst [vmem:[%s322 + $0x74] sm:$0xf] %v2254
        %2287 = vst [vmem:[%s322 + $0x78] sm:$0xf] %v2255
        %2288 = vst [vmem:[%s322 + $0x7c] sm:$0xf] %v2256
        %s2289 = sand.u32 %s183, 1
        %s2290 = scalar_lea.sflag [#allocation4], %s2289
        %s2291 = sand.u32 %s183, 1
        %s2292 = smul.addr %s2291, 64
        %s2293 = scalar_lea.vmem [#allocation3], %s2292
        %s2294 = sand.u32 %s211, 1
        %s2295 = scalar_lea.sflag [#allocation6], %s2294
        %s2296 = sand.u32 %s211, 1
        %s2297 = smul.addr %s2296, 128
        %s2298 = scalar_lea.vmem [#allocation5], %s2297
        // Predicated region
        $region49: #{tpu_custom_call.1} parent=43 // pred_check
          %p2299 = pneg %p193
        $region50: #{tpu_custom_call.1} parent=43 // pred_check_branch
          %2301 = sbr.rel (%p2299) target = $region52
        $region51: #{tpu_custom_call.1} parent=43 // pred_region
          %2303 = vsyncadd %s2290, 0
          %s2304 = smul.addr %s29, 16
          %s2305 = smul.addr %s2304, 4
          %s2306 = scalar_lea.hbm %s6, %s2305
          %s2307 = sshll.u32 %s2293, 4
          %s2308 = int_to_ptr.vmem [resolvable:$true] %s2307
          %s2309 = sshll.u32 %s2306, 4
          %s2310 = int_to_ptr.hbm [resolvable:$true] %s2309
          %2315 = dma.vmem_to_hbm [thread:$0]  %s2308, 1024, %s2310, %s2290, 64, 64, 4
        $region52: #{tpu_custom_call.1} parent=43 // pred_fallthru
          _
        // Predicated region
        $region53: #{tpu_custom_call.1} parent=43 // pred_check
          %p2316 = pneg %p221
        $region54: #{tpu_custom_call.1} parent=43 // pred_check_branch
          %2318 = sbr.rel (%p2316) target = $region56
        $region55: #{tpu_custom_call.1} parent=43 // pred_region
          %s2319 = smul.u32 32, %s30
          %2321 = vsyncadd %s2295, 0
          %s2322 = smul.addr %s29, 32
          %s2323 = sadd.s32 %s2319, %s2322
          %s2324 = smul.addr %s2323, 4
          %s2325 = scalar_lea.hbm %s7, %s2324
          %s2326 = sshll.u32 %s2298, 4
          %s2327 = int_to_ptr.vmem [resolvable:$true] %s2326
          %s2328 = sshll.u32 %s2325, 4
          %s2329 = int_to_ptr.hbm [resolvable:$true] %s2328
          %2334 = dma.vmem_to_hbm [thread:$0]  %s2327, 2048, %s2329, %s2295, 64, 64, 4
        $region56: #{tpu_custom_call.1} parent=43 // pred_fallthru
          _
      $region44: #{tpu_custom_call.1} parent=5 // pred_fallthru
        _
      %p2335 = scmp.le.s32.totalorder 2, %s20
      // Predicated region
      $region57: #{tpu_custom_call.1} parent=5 // pred_check
        %p2336 = pneg %p2335
      $region58: #{tpu_custom_call.1} parent=5 // pred_check_branch
        %2338 = sbr.rel (%p2336) target = $region60
      $region59: #{tpu_custom_call.1} parent=5 // pred_region
        %s2339 = ssub.s32 %s20, 2
        // Predicated region
        $region61: #{tpu_custom_call.1} parent=59 // pred_check
          %p2340 = pneg %p199
        $region62: #{tpu_custom_call.1} parent=59 // pred_check_branch
          %2342 = sbr.rel (%p2340) target = $region64
        $region63: #{tpu_custom_call.1} parent=59 // pred_region
          %s2343 = sand.u32 %s184, 1
          %s2344 = scalar_lea.sflag [#allocation4], %s2343
          %s2345 = sand.u32 %s184, 1
          %s2346 = smul.addr %s2345, 64
          %s2347 = scalar_lea.vmem [#allocation3], %s2346
          %2349 = dma.done %s2344, 1024
        $region64: #{tpu_custom_call.1} parent=59 // pred_fallthru
          _
        // Predicated region
        $region65: #{tpu_custom_call.1} parent=59 // pred_check
          %p2350 = pneg %p227
        $region66: #{tpu_custom_call.1} parent=59 // pred_check_branch
          %2352 = sbr.rel (%p2350) target = $region68
        $region67: #{tpu_custom_call.1} parent=59 // pred_region
          %s2353 = sand.u32 %s212, 1
          %s2354 = scalar_lea.sflag [#allocation6], %s2353
          %s2355 = sand.u32 %s212, 1
          %s2356 = smul.addr %s2355, 128
          %s2357 = scalar_lea.vmem [#allocation5], %s2356
          %2359 = dma.done %s2354, 2048
        $region68: #{tpu_custom_call.1} parent=59 // pred_fallthru
          _
      $region60: #{tpu_custom_call.1} parent=5 // pred_fallthru
        _
    $region6: #{tpu_custom_call.1} parent=1 // loop_footer
      %s24 = sadd.s32 1, %s20
    $region7: #{tpu_custom_call.1} parent=1 // loop_footer_branch
      %19 = sbr.rel target = $region3
    $region8: #{tpu_custom_call.1} parent=1 // loop_exit
      _
    %2360 = vsyncpa [#allocation4], 1
    %s2361 = scalar_lea.sflag [#allocation4], 1
    %2362 = vsyncpa %s2361, 1
    %2363 = vsyncpa [#allocation6], 1
    %s2364 = scalar_lea.sflag [#allocation6], 1
    %2365 = vsyncpa %s2364, 1

</llo_original>
